<compile_context>
chip_gen: v7x
topology: tpu7x:2x2x1
jax: 0.10.0
libtpu: 0.0.40
codegen_flags: <defaults>
</compile_context>

<pallas_src>
import functools

import jax
import jax.numpy as jnp
from jax.experimental import pallas as pl
from jax.experimental.pallas import tpu as pltpu

_VMEM_LIMIT = 48 * 1024 * 1024     # headroom inside v7x's 64 MiB physical VMEM


def _const_spec(shape, index_map):
    """BlockSpec for an operand whose block never changes across the grid.

    Single-buffer it (halves constant-weight VMEM, matters on v7x) when the
    installed Pallas supports pipeline_mode; otherwise fall back silently.
    """
    try:
        return pl.BlockSpec(shape, index_map, pipeline_mode=pl.Buffered(1))
    except Exception:                       # older Pallas without pipeline_mode
        return pl.BlockSpec(shape, index_map)


def _layernorm(v, g, b, eps=1e-5):
    m = jnp.mean(v, axis=-1, keepdims=True)
    c = v - m
    var = jnp.mean(c * c, axis=-1, keepdims=True)
    return c * jax.lax.rsqrt(var + eps) * g + b


# ---------------------------------------------------------------------------
# Kernel 1: fused decomp + down-conv + (K_iso-tiled) isometric conv + LN +
#           transpose-conv + residual + LN trunk
# ---------------------------------------------------------------------------
def _trunk_kernel(src_ref, wd_ref, wi_ref, wt_ref, vec_ref, o_ref,
                  xc_ref, acc_ref, *, Bt, L, D, Kc, Kt, Ld, Lo, Lt, padc,
                  decomp_k, mxu_dtype):
    kt = pl.program_id(1)
    n_kt = pl.num_programs(1)

    def decomp_res():
        # series_decomp residual: x - moving_avg(x, decomp_k), replicate pad.
        x = src_ref[...].astype(jnp.float32)                    # (Bt, L, D)
        pad = (decomp_k - 1) // 2
        acc = x
        for j in range(decomp_k):
            off = j - pad
            if off == 0:
                continue
            if off < 0:
                edge = jnp.broadcast_to(x[:, :1, :], (Bt, -off, D))
                sh = jnp.concatenate([edge, x[:, :L + off, :]], axis=1)
            else:
                edge = jnp.broadcast_to(x[:, L - 1:, :], (Bt, off, D))
                sh = jnp.concatenate([x[:, off:, :], edge], axis=1)
            acc = acc + sh
        return x - acc * (1.0 / decomp_k)

    # ---- first K_iso tile: down-conv, build xc scratch, zero accumulator ----
    @pl.when(kt == 0)
    def _init():
        s = decomp_res()
        # zero-padded down-conv input (stride == kernel -> non-overlapping taps)
        n_copy = min(L, Ld * Kc - padc)
        parts = []
        if padc > 0:
            parts.append(jnp.zeros((Bt, padc, D), jnp.float32))
        parts.append(s[:, :n_copy, :])
        tail = Ld * Kc - padc - n_copy
        if tail > 0:
            parts.append(jnp.zeros((Bt, tail, D), jnp.float32))
        sp = jnp.concatenate(parts, axis=1) if len(parts) > 1 else parts[0]
        sp4 = sp.reshape(Bt, Ld, Kc, D).astype(mxu_dtype)       # (Bt, Ld, Kc, D)
        x1 = jnp.zeros((Bt * Ld, D), jnp.float32)
        for k in range(Kc):
            x1 = x1 + jnp.dot(sp4[:, :, k, :].reshape(Bt * Ld, D), wd_ref[k],
                              preferred_element_type=jnp.float32)
        x1 = jnp.tanh(x1 + vec_ref[0, :])
        # xc = [zeros(Ld-1) | x1 | zeros (tail pad for the last K_iso tile)]
        xc_ref[...] = jnp.zeros_like(xc_ref)
        xc_ref[:, Ld - 1:2 * Ld - 1, :] = (
            x1.reshape(Bt, Ld, D).astype(xc_ref.dtype))
        acc_ref[...] = jnp.zeros_like(acc_ref)

    # ---- isometric conv: accumulate the Kt taps of this weight tile ----
    base = kt * Kt
    part = jnp.zeros((Bt * Lo, D), jnp.float32)
    for j in range(Kt):
        xw = xc_ref[:, pl.ds(base + j, Lo), :]                  # (Bt, Lo, D)
        part = part + jnp.dot(xw.reshape(Bt * Lo, D).astype(mxu_dtype),
                              wi_ref[j], preferred_element_type=jnp.float32)
    acc_ref[...] += part.reshape(Bt, Lo, D)

    # ---- last K_iso tile: finish the trunk, write interleaved output ----
    @pl.when(kt == n_kt - 1)
    def _finish():
        g = vec_ref[3, :]
        b = vec_ref[4, :]
        xi = jnp.tanh(acc_ref[...] + vec_ref[1, :])             # (Bt, Lo, D)
        xn = _layernorm(xi + xi, g, b)
        # transpose conv (stride == kernel): one wide matmul over all Kc taps
        yt = jnp.dot(xn.reshape(Bt * Lo, D).astype(mxu_dtype), wt_ref[...],
                     preferred_element_type=jnp.float32)        # (Bt*Lo, Kc*D)
        yt = yt.reshape(Bt, Lo, Kc * D)[:, :Lt, :]
        taps = [yt[:, :, k * D:(k + 1) * D] for k in range(Kc)]
        y = jnp.stack(taps, axis=2).reshape(Bt, L, D)           # interleave taps
        y = jnp.tanh(y + vec_ref[2, :])
        u = y + decomp_res()                                    # residual add
        o_ref[...] = _layernorm(u, g, b).astype(o_ref.dtype)


def _trunk_call(src, p, *, Kc, K_iso, decomp_k, mxu_dtype, batch_tile,
                kiso_tile):
    B, L, D = src.shape
    if L % Kc != 0:
        raise ValueError("seq_len must be a multiple of conv_kernel (as in MICN)")
    padc = Kc // 2
    Ld = (L + 2 * padc - Kc) // Kc + 1
    Lc = 2 * Ld - 1
    Lo = Lc - K_iso + 1
    Lt = L // Kc
    if Lo < Lt or Lo < 1:
        raise ValueError("isometric kernel too large for this sequence length")

    # largest divisor of B that is <= batch_tile (fills the MXU M dimension)
    Bt = max(d for d in range(1, min(batch_tile, B) + 1) if B % d == 0)
    Kt = min(kiso_tile, K_iso)
    n_kt = pl.cdiv(K_iso, Kt)
    K_pad = n_kt * Kt
    Lc_pad = Lo + K_pad - 1

    # weight packing (in production these would be pre-packed once)
    wd = jnp.transpose(p['conv_w'], (2, 1, 0)).astype(mxu_dtype)   # (Kc, Din, Dout)
    wi = jnp.transpose(p['iso_w'], (2, 1, 0))                      # (K_iso, Din, Dout)
    if K_pad > K_iso:
        wi = jnp.concatenate(
            [wi, jnp.zeros((K_pad - K_iso, D, D), wi.dtype)], axis=0)
    wi = wi.astype(mxu_dtype)
    wt = jnp.transpose(p['trans_w'], (0, 2, 1)).reshape(D, Kc * D).astype(mxu_dtype)

    # biases / LayerNorm params packed into one (8, D) operand
    vec = jnp.zeros((8, D), jnp.float32)
    vec = (vec.at[0].set(p['conv_b']).at[1].set(p['iso_b'])
              .at[2].set(p['trans_b']).at[3].set(p['norm_g'])
              .at[4].set(p['norm_b']))

    kern = functools.partial(
        _trunk_kernel, Bt=Bt, L=L, D=D, Kc=Kc, Kt=Kt, Ld=Ld, Lo=Lo, Lt=Lt,
        padc=padc, decomp_k=decomp_k, mxu_dtype=mxu_dtype)

    return pl.pallas_call(
        kern,
        out_shape=jax.ShapeDtypeStruct((B, L, D), src.dtype),
        grid=(B // Bt, n_kt),
        in_specs=[
            pl.BlockSpec((Bt, L, D), lambda b, k: (b, 0, 0)),        # src
            _const_spec((Kc, D, D), lambda b, k: (0, 0, 0)),         # w_down
            pl.BlockSpec((Kt, D, D), lambda b, k: (k, 0, 0)),        # w_iso tile
            _const_spec((D, Kc * D), lambda b, k: (0, 0)),           # w_trans
            _const_spec((8, D), lambda b, k: (0, 0)),                # biases / LN
        ],
        out_specs=pl.BlockSpec((Bt, L, D), lambda b, k: (b, 0, 0)),
        scratch_shapes=[pltpu.VMEM((Bt, Lc_pad, D), mxu_dtype),      # xc
                        pltpu.VMEM((Bt, Lo, D), jnp.float32)],       # iso accumulator
        compiler_params=pltpu.CompilerParams(
            dimension_semantics=("parallel", "arbitrary"),
            vmem_limit_bytes=_VMEM_LIMIT),
    )(src, wd, wi, wt, vec)


# ---------------------------------------------------------------------------
# Kernel 2: fused merge (1x1) + LN1 + FF (D->4D->D) + residual + LN2
# ---------------------------------------------------------------------------
def _merge_ff_kernel(u_ref, wm_ref, w1_ref, c1b_ref, w2_ref, vec_ref, o_ref,
                     *, mxu_dtype):
    u = u_ref[...].astype(mxu_dtype)
    mg = jnp.dot(u, wm_ref[...], preferred_element_type=jnp.float32) + vec_ref[0, :]
    y = _layernorm(mg, vec_ref[1, :], vec_ref[2, :])
    h = jnp.dot(y.astype(mxu_dtype), w1_ref[...],
                preferred_element_type=jnp.float32) + c1b_ref[...]
    z = jnp.dot(h.astype(mxu_dtype), w2_ref[...],
                preferred_element_type=jnp.float32) + vec_ref[3, :]
    o_ref[...] = _layernorm(mg + z, vec_ref[4, :], vec_ref[5, :]).astype(o_ref.dtype)


def _merge_ff_call(u2, p, *, mxu_dtype, row_tile):
    M, D = u2.shape
    H = p['c1_w'].shape[0]
    # row_tile=512 keeps v7x comfortably inside VMEM; v5e/v6e can raise it.
    tm = M if M <= row_tile else row_tile
    wm = p['merge_w'][:, :, 0, 0].T.astype(mxu_dtype)
    w1 = p['c1_w'][:, :, 0].T.astype(mxu_dtype)
    w2 = p['c2_w'][:, :, 0].T.astype(mxu_dtype)
    vec = jnp.zeros((8, D), jnp.float32)
    vec = (vec.at[0].set(p['merge_b']).at[1].set(p['n1_g']).at[2].set(p['n1_b'])
              .at[3].set(p['c2_b']).at[4].set(p['n2_g']).at[5].set(p['n2_b']))
    return pl.pallas_call(
        functools.partial(_merge_ff_kernel, mxu_dtype=mxu_dtype),
        out_shape=jax.ShapeDtypeStruct((M, D), u2.dtype),
        grid=(pl.cdiv(M, tm),),
        in_specs=[
            pl.BlockSpec((tm, D), lambda i: (i, 0)),
            _const_spec((D, D), lambda i: (0, 0)),
            _const_spec((D, H), lambda i: (0, 0)),
            _const_spec((1, H), lambda i: (0, 0)),
            _const_spec((H, D), lambda i: (0, 0)),
            _const_spec((8, D), lambda i: (0, 0)),
        ],
        out_specs=pl.BlockSpec((tm, D), lambda i: (i, 0)),
        compiler_params=pltpu.CompilerParams(
            dimension_semantics=("parallel",),
            vmem_limit_bytes=_VMEM_LIMIT),
    )(u2, wm, w1, p['c1_b'].reshape(1, H), w2, vec)


# ---------------------------------------------------------------------------
# MIC forward (len(conv_kernel) == 1, as in the reference defaults)
# ---------------------------------------------------------------------------
def mic_forward(src, p, *, decomp_k=3, mxu_dtype=jnp.bfloat16,
                batch_tile=4, kiso_tile=8, row_tile=512):
    B, L, D = src.shape
    Kc = p['conv_w'].shape[-1]
    K_iso = p['iso_w'].shape[-1]
    u = _trunk_call(src, p, Kc=Kc, K_iso=K_iso, decomp_k=decomp_k,
                    mxu_dtype=mxu_dtype, batch_tile=batch_tile,
                    kiso_tile=kiso_tile)
    out = _merge_ff_call(u.reshape(B * L, D), p,
                         mxu_dtype=mxu_dtype, row_tile=row_tile)
    return out.reshape(B, L, D)


# ---------------------------------------------------------------------------
# Pure-JAX reference (written directly from the PyTorch semantics)
# ---------------------------------------------------------------------------
def ref_forward(src, p, decomp_k=3):
    P = jax.lax.Precision.HIGHEST
    B, L, D = src.shape
    Kc = p['conv_w'].shape[-1]
    Ki = p['iso_w'].shape[-1]
    pad = (decomp_k - 1) // 2

    def ln(v, g, b, eps=1e-5):
        m = v.mean(-1, keepdims=True)
        c = v - m
        var = (c * c).mean(-1, keepdims=True)
        return c * jax.lax.rsqrt(var + eps) * g + b

    xp = jnp.concatenate(
        [jnp.repeat(src[:, :1], pad, axis=1), src,
         jnp.repeat(src[:, -1:], pad, axis=1)], axis=1)
    mov = sum(xp[:, j:j + L] for j in range(decomp_k)) / decomp_k
    s = src - mov

    x = jnp.transpose(s, (0, 2, 1))                              # (B, D, L)
    padc = Kc // 2
    xz = jnp.pad(x, ((0, 0), (0, 0), (padc, padc)))
    Ld = (L + 2 * padc - Kc) // Kc + 1
    taps = jnp.stack([xz[:, :, Kc * t:Kc * t + Kc] for t in range(Ld)], axis=2)
    x1 = jnp.tanh(jnp.einsum('bitk,oik->bot', taps, p['conv_w'], precision=P)
                  + p['conv_b'][None, :, None])
    xc = jnp.concatenate([jnp.zeros((B, D, Ld - 1), src.dtype), x1], axis=-1)
    Lo = xc.shape[-1] - Ki + 1
    taps2 = jnp.stack([xc[:, :, t:t + Ki] for t in range(Lo)], axis=2)
    xi = jnp.tanh(jnp.einsum('bitk,oik->bot', taps2, p['iso_w'], precision=P)
                  + p['iso_b'][None, :, None])
    xn = ln(jnp.transpose(xi + xi, (0, 2, 1)), p['norm_g'], p['norm_b'])
    xn = jnp.transpose(xn, (0, 2, 1))
    ot = jnp.einsum('bit,iok->botk', xn, p['trans_w'],
                    precision=P).reshape(B, D, Kc * Lo)
    xt = jnp.tanh(ot + p['trans_b'][None, :, None])[:, :, :L]
    u = ln(jnp.transpose(xt, (0, 2, 1)) + s, p['norm_g'], p['norm_b'])

    mg = jnp.einsum('bld,od->blo', u, p['merge_w'][:, :, 0, 0],
                    precision=P) + p['merge_b']
    y = ln(mg, p['n1_g'], p['n1_b'])
    y = jnp.einsum('bld,od->blo', y, p['c1_w'][:, :, 0], precision=P) + p['c1_b']
    y = jnp.einsum('bld,od->blo', y, p['c2_w'][:, :, 0], precision=P) + p['c2_b']
    return ln(mg + y, p['n2_g'], p['n2_b'])


# ---------------------------------------------------------------------------
def init_params(key, D, K_conv, K_iso):
    ks = jax.random.split(key, 12)

    def rnd(k, shape, scale=0.1):
        return (jax.random.normal(k, shape) * scale).astype(jnp.float32)

    return dict(
        conv_w=rnd(ks[0], (D, D, K_conv)), conv_b=rnd(ks[1], (D,)),
        iso_w=rnd(ks[2], (D, D, K_iso)), iso_b=rnd(ks[3], (D,)),
        trans_w=rnd(ks[4], (D, D, K_conv)), trans_b=rnd(ks[5], (D,)),
        merge_w=rnd(ks[6], (D, D, 1, 1)), merge_b=rnd(ks[7], (D,)),
        c1_w=rnd(ks[8], (4 * D, D, 1)), c1_b=rnd(ks[9], (4 * D,)),
        c2_w=rnd(ks[10], (D, 4 * D, 1)), c2_b=rnd(ks[11], (D,)),
        norm_g=jnp.ones((D,), jnp.float32), norm_b=jnp.zeros((D,), jnp.float32),
        n1_g=jnp.ones((D,), jnp.float32), n1_b=jnp.zeros((D,), jnp.float32),
        n2_g=jnp.ones((D,), jnp.float32), n2_b=jnp.zeros((D,), jnp.float32),
    )


if __name__ == "__main__":
    B, L, D = 2, 8, 32           # (batch, seq_len, feature_size)
    K_conv = 2                   # conv_kernel = [2]
    K_iso = L // 2 + 1           # isometric kernel matched to seq_len (=5)

    key = jax.random.PRNGKey(0)
    k_src, k_par = jax.random.split(key)
    src = jax.random.normal(k_src, (B, L, D), dtype=jnp.float32)
    params = init_params(k_par, D, K_conv, K_iso)

    ref = ref_forward(src, params)

    # 1) exact-math run (f32 MXU operands): strict correctness check.  Also
    #    exercises the K_iso tiling (kiso_tile=2 -> 3 grid steps incl. a
    #    zero-padded tail tile) and the Bt=1 batch-tiling path.
    f32_fwd = jax.jit(functools.partial(
        mic_forward, mxu_dtype=jnp.float32, kiso_tile=2, batch_tile=1))
    out = jax.block_until_ready(f32_fwd(src, params))
    assert out.shape == (B, L, D)
    assert jnp.all(jnp.isfinite(out))
    err = float(jnp.max(jnp.abs(out - ref)))
    assert err < 2e-4, f"f32 path max abs err {err}"

    # 2) production run (bf16 MXU operands, f32 accumulate): loose sanity bound
    #    (bf16 operand rounding makes an exact f32 match impossible).
    bf16_fwd = jax.jit(mic_forward)
    out_bf = jax.block_until_ready(bf16_fwd(src, params))
    assert out_bf.shape == (B, L, D)
    assert jnp.all(jnp.isfinite(out_bf))
    err_bf = float(jnp.max(jnp.abs(out_bf - ref)))
    assert err_bf < 0.2, f"bf16 path max abs err {err_bf}"

    print("KERNEL_OK")
</pallas_src>

<mosaic_0001>
module attributes {stable_mosaic.version = 11 : i64} {
  func.func @_trunk_kernel(%arg0: i32, %arg1: i32, %arg2: memref<1x8x32xf32, #tpu.memory_space<vmem>>, %arg3: memref<2x32x32xf32, #tpu.memory_space<vmem>>, %arg4: memref<2x32x32xf32, #tpu.memory_space<vmem>>, %arg5: memref<32x64xf32, #tpu.memory_space<vmem>>, %arg6: memref<8x32xf32, #tpu.memory_space<vmem>>, %arg7: memref<1x8x32xf32, #tpu.memory_space<vmem>>, %arg8: memref<1x10x32xf32, #tpu.memory_space<vmem>>, %arg9: memref<1x5x32xf32, #tpu.memory_space<vmem>>) attributes {dimension_semantics = [#tpu.dimension_semantics<parallel>, #tpu.dimension_semantics<arbitrary>], iteration_bounds = array<i64: 2, 3>, scalar_prefetch = 0 : i64, scratch_operands = 2 : i64, tpu.core_type = #tpu.core_type<tc>, window_params = [{transform_indices = @transform_0, window_bounds = array<i64: 1, 8, 32>}, {pipeline_mode = #tpu.pipeline_mode<synchronous>, transform_indices = @transform_1, window_bounds = array<i64: 2, 32, 32>}, {transform_indices = @transform_2, window_bounds = array<i64: 2, 32, 32>}, {pipeline_mode = #tpu.pipeline_mode<synchronous>, transform_indices = @transform_3, window_bounds = array<i64: 32, 64>}, {pipeline_mode = #tpu.pipeline_mode<synchronous>, transform_indices = @transform_4, window_bounds = array<i64: 8, 32>}, {transform_indices = @transform_5, window_bounds = array<i64: 1, 8, 32>}]} {
    %c0_i32 = arith.constant 0 : i32
    %0 = arith.cmpi eq, %arg1, %c0_i32 : i32
    %1 = arith.extui %0 : i1 to i32
    %c0_i32_0 = arith.constant 0 : i32
    %2 = arith.cmpi ne, %1, %c0_i32_0 : i32
    scf.if %2 {
      %c0_20 = arith.constant 0 : index
      %c0_21 = arith.constant 0 : index
      %c0_22 = arith.constant 0 : index
      %28 = vector.load %arg2[%c0_20, %c0_21, %c0_22] : memref<1x8x32xf32, #tpu.memory_space<vmem>>, vector<1x8x32xf32>
      %29 = vector.extract_strided_slice %28 {offsets = [0, 0, 0], sizes = [1, 1, 32], strides = [1, 1, 1]} : vector<1x8x32xf32> to vector<1x1x32xf32>
      %30 = vector.extract_strided_slice %28 {offsets = [0, 0, 0], sizes = [1, 7, 32], strides = [1, 1, 1]} : vector<1x8x32xf32> to vector<1x7x32xf32>
      %31 = tpu.concatenate %29, %30 in 1 : vector<1x1x32xf32>, vector<1x7x32xf32> -> vector<1x8x32xf32>
      %32 = arith.addf %28, %31 : vector<1x8x32xf32>
      %33 = vector.extract_strided_slice %28 {offsets = [0, 7, 0], sizes = [1, 1, 32], strides = [1, 1, 1]} : vector<1x8x32xf32> to vector<1x1x32xf32>
      %34 = vector.extract_strided_slice %28 {offsets = [0, 1, 0], sizes = [1, 7, 32], strides = [1, 1, 1]} : vector<1x8x32xf32> to vector<1x7x32xf32>
      %35 = tpu.concatenate %34, %33 in 1 : vector<1x7x32xf32>, vector<1x1x32xf32> -> vector<1x8x32xf32>
      %36 = arith.addf %32, %35 : vector<1x8x32xf32>
      %cst_23 = arith.constant 0.333333343 : f32
      %37 = vector.broadcast %cst_23 : f32 to vector<1x8x32xf32>
      %38 = arith.mulf %36, %37 : vector<1x8x32xf32>
      %39 = arith.subf %28, %38 : vector<1x8x32xf32>
      %cst_24 = arith.constant 0.000000e+00 : f32
      %40 = vector.broadcast %cst_24 : f32 to vector<1x1x32xf32>
      %cst_25 = arith.constant 0.000000e+00 : f32
      %41 = vector.broadcast %cst_25 : f32 to vector<1x1x32xf32>
      %42 = tpu.concatenate %40, %39, %41 in 1 : vector<1x1x32xf32>, vector<1x8x32xf32>, vector<1x1x32xf32> -> vector<1x10x32xf32>
      %43 = vector.shape_cast %42 : vector<1x10x32xf32> to vector<1x5x2x32xf32>
      %cst_26 = arith.constant 0.000000e+00 : f32
      %44 = vector.broadcast %cst_26 : f32 to vector<5x32xf32>
      %45 = vector.extract_strided_slice %43 {offsets = [0, 0, 0, 0], sizes = [1, 5, 1, 32], strides = [1, 1, 1, 1]} : vector<1x5x2x32xf32> to vector<1x5x1x32xf32>
      %46 = vector.shape_cast %45 : vector<1x5x1x32xf32> to vector<1x5x32xf32>
      %47 = vector.shape_cast %46 : vector<1x5x32xf32> to vector<5x32xf32>
      %c0_27 = arith.constant 0 : index
      %c0_28 = arith.constant 0 : index
      %c0_29 = arith.constant 0 : index
      %48 = vector.load %arg3[%c0_27, %c0_28, %c0_29] : memref<2x32x32xf32, #tpu.memory_space<vmem>>, vector<1x32x32xf32>
      %49 = vector.shape_cast %48 : vector<1x32x32xf32> to vector<32x32xf32>
      %cst_30 = arith.constant dense<0.000000e+00> : vector<5x32xf32>
      %50 = tpu.matmul %47, %49, %cst_30 {dimension_numbers = #tpu.dot_dimension_numbers<[1], [0], [0], [1], [0, 0, 1, 1], [], []>} : vector<5x32xf32>, vector<32x32xf32>, vector<5x32xf32> -> vector<5x32xf32>
      %51 = arith.addf %44, %50 : vector<5x32xf32>
      %52 = vector.extract_strided_slice %43 {offsets = [0, 0, 1, 0], sizes = [1, 5, 1, 32], strides = [1, 1, 1, 1]} : vector<1x5x2x32xf32> to vector<1x5x1x32xf32>
      %53 = vector.shape_cast %52 : vector<1x5x1x32xf32> to vector<1x5x32xf32>
      %54 = vector.shape_cast %53 : vector<1x5x32xf32> to vector<5x32xf32>
      %c1_31 = arith.constant 1 : index
      %c0_32 = arith.constant 0 : index
      %c0_33 = arith.constant 0 : index
      %55 = vector.load %arg3[%c1_31, %c0_32, %c0_33] : memref<2x32x32xf32, #tpu.memory_space<vmem>>, vector<1x32x32xf32>
      %56 = vector.shape_cast %55 : vector<1x32x32xf32> to vector<32x32xf32>
      %cst_34 = arith.constant dense<0.000000e+00> : vector<5x32xf32>
      %57 = tpu.matmul %54, %56, %cst_34 {dimension_numbers = #tpu.dot_dimension_numbers<[1], [0], [0], [1], [0, 0, 1, 1], [], []>} : vector<5x32xf32>, vector<32x32xf32>, vector<5x32xf32> -> vector<5x32xf32>
      %58 = arith.addf %51, %57 : vector<5x32xf32>
      %c0_35 = arith.constant 0 : index
      %c0_36 = arith.constant 0 : index
      %59 = vector.load %arg6[%c0_35, %c0_36] : memref<8x32xf32, #tpu.memory_space<vmem>>, vector<1x32xf32>
      %60 = vector.shape_cast %59 : vector<1x32xf32> to vector<32xf32>
      %61 = vector.shape_cast %60 : vector<32xf32> to vector<1x32xf32>
      %62 = vector.broadcast %61 : vector<1x32xf32> to vector<5x32xf32>
      %63 = arith.addf %58, %62 : vector<5x32xf32>
      %64 = math.tanh %63 : vector<5x32xf32>
      %cst_37 = arith.constant 0.000000e+00 : f32
      %65 = vector.broadcast %cst_37 : f32 to vector<1x10x32xf32>
      %c0_38 = arith.constant 0 : index
      %c0_39 = arith.constant 0 : index
      %c0_40 = arith.constant 0 : index
      %66 = vector.load %arg8[%c0_38, %c0_39, %c0_40] : memref<1x10x32xf32, #tpu.memory_space<vmem>>, vector<1x10x32xf32>
      tpu.vector_store %arg8[%c0_38, %c0_39, %c0_40], %65 {strides = array<i32>} : memref<1x10x32xf32, #tpu.memory_space<vmem>>, vector<1x10x32xf32>,
      %67 = vector.shape_cast %64 : vector<5x32xf32> to vector<1x5x32xf32>
      %c0_41 = arith.constant 0 : index
      %c4 = arith.constant 4 : index
      %c0_42 = arith.constant 0 : index
      %68 = vector.load %arg8[%c0_41, %c4, %c0_42] : memref<1x10x32xf32, #tpu.memory_space<vmem>>, vector<1x5x32xf32>
      tpu.vector_store %arg8[%c0_41, %c4, %c0_42], %67 {strides = array<i32>} : memref<1x10x32xf32, #tpu.memory_space<vmem>>, vector<1x5x32xf32>,
      %cst_43 = arith.constant 0.000000e+00 : f32
      %69 = vector.broadcast %cst_43 : f32 to vector<1x5x32xf32>
      %c0_44 = arith.constant 0 : index
      %c0_45 = arith.constant 0 : index
      %c0_46 = arith.constant 0 : index
      %70 = vector.load %arg9[%c0_44, %c0_45, %c0_46] : memref<1x5x32xf32, #tpu.memory_space<vmem>>, vector<1x5x32xf32>
      tpu.vector_store %arg9[%c0_44, %c0_45, %c0_46], %69 {strides = array<i32>} : memref<1x5x32xf32, #tpu.memory_space<vmem>>, vector<1x5x32xf32>,
    } else {
    }
    %c2_i32 = arith.constant 2 : i32
    %3 = arith.muli %arg1, %c2_i32 : i32
    %cst = arith.constant 0.000000e+00 : f32
    %4 = vector.broadcast %cst : f32 to vector<5x32xf32>
    %c0_i32_1 = arith.constant 0 : i32
    %5 = arith.addi %3, %c0_i32_1 : i32
    %c0 = arith.constant 0 : index
    %6 = arith.index_cast %5 : i32 to index
    %c0_2 = arith.constant 0 : index
    %7 = vector.load %arg8[%c0, %6, %c0_2] : memref<1x10x32xf32, #tpu.memory_space<vmem>>, vector<1x5x32xf32>
    %8 = vector.shape_cast %7 : vector<1x5x32xf32> to vector<5x32xf32>
    %c0_3 = arith.constant 0 : index
    %c0_4 = arith.constant 0 : index
    %c0_5 = arith.constant 0 : index
    %9 = vector.load %arg4[%c0_3, %c0_4, %c0_5] : memref<2x32x32xf32, #tpu.memory_space<vmem>>, vector<1x32x32xf32>
    %10 = vector.shape_cast %9 : vector<1x32x32xf32> to vector<32x32xf32>
    %cst_6 = arith.constant dense<0.000000e+00> : vector<5x32xf32>
    %11 = tpu.matmul %8, %10, %cst_6 {dimension_numbers = #tpu.dot_dimension_numbers<[1], [0], [0], [1], [0, 0, 1, 1], [], []>} : vector<5x32xf32>, vector<32x32xf32>, vector<5x32xf32> -> vector<5x32xf32>
    %12 = arith.addf %4, %11 : vector<5x32xf32>
    %c1_i32 = arith.constant 1 : i32
    %13 = arith.addi %3, %c1_i32 : i32
    %c0_7 = arith.constant 0 : index
    %14 = arith.index_cast %13 : i32 to index
    %c0_8 = arith.constant 0 : index
    %15 = vector.load %arg8[%c0_7, %14, %c0_8] : memref<1x10x32xf32, #tpu.memory_space<vmem>>, vector<1x5x32xf32>
    %16 = vector.shape_cast %15 : vector<1x5x32xf32> to vector<5x32xf32>
    %c1 = arith.constant 1 : index
    %c0_9 = arith.constant 0 : index
    %c0_10 = arith.constant 0 : index
    %17 = vector.load %arg4[%c1, %c0_9, %c0_10] : memref<2x32x32xf32, #tpu.memory_space<vmem>>, vector<1x32x32xf32>
    %18 = vector.shape_cast %17 : vector<1x32x32xf32> to vector<32x32xf32>
    %cst_11 = arith.constant dense<0.000000e+00> : vector<5x32xf32>
    %19 = tpu.matmul %16, %18, %cst_11 {dimension_numbers = #tpu.dot_dimension_numbers<[1], [0], [0], [1], [0, 0, 1, 1], [], []>} : vector<5x32xf32>, vector<32x32xf32>, vector<5x32xf32> -> vector<5x32xf32>
    %20 = arith.addf %12, %19 : vector<5x32xf32>
    %c0_12 = arith.constant 0 : index
    %c0_13 = arith.constant 0 : index
    %c0_14 = arith.constant 0 : index
    %21 = vector.load %arg9[%c0_12, %c0_13, %c0_14] : memref<1x5x32xf32, #tpu.memory_space<vmem>>, vector<1x5x32xf32>
    %22 = vector.shape_cast %20 : vector<5x32xf32> to vector<1x5x32xf32>
    %23 = arith.addf %21, %22 : vector<1x5x32xf32>
    %c0_15 = arith.constant 0 : index
    %c0_16 = arith.constant 0 : index
    %c0_17 = arith.constant 0 : index
    %24 = vector.load %arg9[%c0_15, %c0_16, %c0_17] : memref<1x5x32xf32, #tpu.memory_space<vmem>>, vector<1x5x32xf32>
    tpu.vector_store %arg9[%c0_15, %c0_16, %c0_17], %23 {strides = array<i32>} : memref<1x5x32xf32, #tpu.memory_space<vmem>>, vector<1x5x32xf32>,
    %c2_i32_18 = arith.constant 2 : i32
    %25 = arith.cmpi eq, %arg1, %c2_i32_18 : i32
    %26 = arith.extui %25 : i1 to i32
    %c0_i32_19 = arith.constant 0 : i32
    %27 = arith.cmpi ne, %26, %c0_i32_19 : i32
    scf.if %27 {
      %c3 = arith.constant 3 : index
      %c0_20 = arith.constant 0 : index
      %28 = vector.load %arg6[%c3, %c0_20] : memref<8x32xf32, #tpu.memory_space<vmem>>, vector<1x32xf32>
      %29 = vector.shape_cast %28 : vector<1x32xf32> to vector<32xf32>
      %c4 = arith.constant 4 : index
      %c0_21 = arith.constant 0 : index
      %30 = vector.load %arg6[%c4, %c0_21] : memref<8x32xf32, #tpu.memory_space<vmem>>, vector<1x32xf32>
      %31 = vector.shape_cast %30 : vector<1x32xf32> to vector<32xf32>
      %c0_22 = arith.constant 0 : index
      %c0_23 = arith.constant 0 : index
      %c0_24 = arith.constant 0 : index
      %32 = vector.load %arg9[%c0_22, %c0_23, %c0_24] : memref<1x5x32xf32, #tpu.memory_space<vmem>>, vector<1x5x32xf32>
      %c1_25 = arith.constant 1 : index
      %c0_26 = arith.constant 0 : index
      %33 = vector.load %arg6[%c1_25, %c0_26] : memref<8x32xf32, #tpu.memory_space<vmem>>, vector<1x32xf32>
      %34 = vector.shape_cast %33 : vector<1x32xf32> to vector<32xf32>
      %35 = vector.shape_cast %34 : vector<32xf32> to vector<1x1x32xf32>
      %36 = vector.broadcast %35 : vector<1x1x32xf32> to vector<1x5x32xf32>
      %37 = arith.addf %32, %36 : vector<1x5x32xf32>
      %38 = math.tanh %37 : vector<1x5x32xf32>
      %39 = arith.addf %38, %38 : vector<1x5x32xf32>
      %cst_27 = arith.constant dense<0.000000e+00> : vector<1x5xf32>
      %40 = vector.multi_reduction <add>, %39, %cst_27 [2] : vector<1x5x32xf32> to vector<1x5xf32>
      %41 = vector.shape_cast %40 : vector<1x5xf32> to vector<1x5x1xf32>
      %cst_28 = arith.constant 3.200000e+01 : f32
      %42 = vector.broadcast %cst_28 : f32 to vector<1x5x1xf32>
      %43 = arith.divf %41, %42 : vector<1x5x1xf32>
      %44 = vector.broadcast %43 : vector<1x5x1xf32> to vector<1x5x32xf32>
      %45 = arith.subf %39, %44 : vector<1x5x32xf32>
      %46 = arith.mulf %45, %45 : vector<1x5x32xf32>
      %cst_29 = arith.constant dense<0.000000e+00> : vector<1x5xf32>
      %47 = vector.multi_reduction <add>, %46, %cst_29 [2] : vector<1x5x32xf32> to vector<1x5xf32>
      %48 = vector.shape_cast %47 : vector<1x5xf32> to vector<1x5x1xf32>
      %cst_30 = arith.constant 3.200000e+01 : f32
      %49 = vector.broadcast %cst_30 : f32 to vector<1x5x1xf32>
      %50 = arith.divf %48, %49 : vector<1x5x1xf32>
      %cst_31 = arith.constant 9.99999974E-6 : f32
      %51 = vector.broadcast %cst_31 : f32 to vector<1x5x1xf32>
      %52 = arith.addf %50, %51 : vector<1x5x1xf32>
      %53 = math.rsqrt %52 : vector<1x5x1xf32>
      %54 = vector.broadcast %53 : vector<1x5x1xf32> to vector<1x5x32xf32>
      %55 = arith.mulf %45, %54 : vector<1x5x32xf32>
      %56 = vector.shape_cast %29 : vector<32xf32> to vector<1x1x32xf32>
      %57 = vector.broadcast %56 : vector<1x1x32xf32> to vector<1x5x32xf32>
      %58 = arith.mulf %55, %57 : vector<1x5x32xf32>
      %59 = vector.shape_cast %31 : vector<32xf32> to vector<1x1x32xf32>
      %60 = vector.broadcast %59 : vector<1x1x32xf32> to vector<1x5x32xf32>
      %61 = arith.addf %58, %60 : vector<1x5x32xf32>
      %62 = vector.shape_cast %61 : vector<1x5x32xf32> to vector<5x32xf32>
      %c0_32 = arith.constant 0 : index
      %c0_33 = arith.constant 0 : index
      %63 = vector.load %arg5[%c0_32, %c0_33] : memref<32x64xf32, #tpu.memory_space<vmem>>, vector<32x64xf32>
      %cst_34 = arith.constant dense<0.000000e+00> : vector<5x64xf32>
      %64 = tpu.matmul %62, %63, %cst_34 {dimension_numbers = #tpu.dot_dimension_numbers<[1], [0], [0], [1], [0, 0, 1, 1], [], []>} : vector<5x32xf32>, vector<32x64xf32>, vector<5x64xf32> -> vector<5x64xf32>
      %65 = vector.shape_cast %64 : vector<5x64xf32> to vector<1x5x64xf32>
      %66 = vector.extract_strided_slice %65 {offsets = [0, 0, 0], sizes = [1, 4, 64], strides = [1, 1, 1]} : vector<1x5x64xf32> to vector<1x4x64xf32>
      %67 = vector.extract_strided_slice %66 {offsets = [0, 0, 0], sizes = [1, 4, 32], strides = [1, 1, 1]} : vector<1x4x64xf32> to vector<1x4x32xf32>
      %68 = vector.extract_strided_slice %66 {offsets = [0, 0, 32], sizes = [1, 4, 32], strides = [1, 1, 1]} : vector<1x4x64xf32> to vector<1x4x32xf32>
      %69 = vector.shape_cast %67 : vector<1x4x32xf32> to vector<1x4x1x32xf32>
      %70 = vector.shape_cast %68 : vector<1x4x32xf32> to vector<1x4x1x32xf32>
      %71 = tpu.concatenate %69, %70 in 2 : vector<1x4x1x32xf32>, vector<1x4x1x32xf32> -> vector<1x4x2x32xf32>
      %72 = vector.shape_cast %71 : vector<1x4x2x32xf32> to vector<1x8x32xf32>
      %c2 = arith.constant 2 : index
      %c0_35 = arith.constant 0 : index
      %73 = vector.load %arg6[%c2, %c0_35] : memref<8x32xf32, #tpu.memory_space<vmem>>, vector<1x32xf32>
      %74 = vector.shape_cast %73 : vector<1x32xf32> to vector<32xf32>
      %75 = vector.shape_cast %74 : vector<32xf32> to vector<1x1x32xf32>
      %76 = vector.broadcast %75 : vector<1x1x32xf32> to vector<1x8x32xf32>
      %77 = arith.addf %72, %76 : vector<1x8x32xf32>
      %78 = math.tanh %77 : vector<1x8x32xf32>
      %c0_36 = arith.constant 0 : index
      %c0_37 = arith.constant 0 : index
      %c0_38 = arith.constant 0 : index
      %79 = vector.load %arg2[%c0_36, %c0_37, %c0_38] : memref<1x8x32xf32, #tpu.memory_space<vmem>>, vector<1x8x32xf32>
      %80 = vector.extract_strided_slice %79 {offsets = [0, 0, 0], sizes = [1, 1, 32], strides = [1, 1, 1]} : vector<1x8x32xf32> to vector<1x1x32xf32>
      %81 = vector.extract_strided_slice %79 {offsets = [0, 0, 0], sizes = [1, 7, 32], strides = [1, 1, 1]} : vector<1x8x32xf32> to vector<1x7x32xf32>
      %82 = tpu.concatenate %80, %81 in 1 : vector<1x1x32xf32>, vector<1x7x32xf32> -> vector<1x8x32xf32>
      %83 = arith.addf %79, %82 : vector<1x8x32xf32>
      %84 = vector.extract_strided_slice %79 {offsets = [0, 7, 0], sizes = [1, 1, 32], strides = [1, 1, 1]} : vector<1x8x32xf32> to vector<1x1x32xf32>
      %85 = vector.extract_strided_slice %79 {offsets = [0, 1, 0], sizes = [1, 7, 32], strides = [1, 1, 1]} : vector<1x8x32xf32> to vector<1x7x32xf32>
      %86 = tpu.concatenate %85, %84 in 1 : vector<1x7x32xf32>, vector<1x1x32xf32> -> vector<1x8x32xf32>
      %87 = arith.addf %83, %86 : vector<1x8x32xf32>
      %cst_39 = arith.constant 0.333333343 : f32
      %88 = vector.broadcast %cst_39 : f32 to vector<1x8x32xf32>
      %89 = arith.mulf %87, %88 : vector<1x8x32xf32>
      %90 = arith.subf %79, %89 : vector<1x8x32xf32>
      %91 = arith.addf %78, %90 : vector<1x8x32xf32>
      %cst_40 = arith.constant dense<0.000000e+00> : vector<1x8xf32>
      %92 = vector.multi_reduction <add>, %91, %cst_40 [2] : vector<1x8x32xf32> to vector<1x8xf32>
      %93 = vector.shape_cast %92 : vector<1x8xf32> to vector<1x8x1xf32>
      %cst_41 = arith.constant 3.200000e+01 : f32
      %94 = vector.broadcast %cst_41 : f32 to vector<1x8x1xf32>
      %95 = arith.divf %93, %94 : vector<1x8x1xf32>
      %96 = vector.broadcast %95 : vector<1x8x1xf32> to vector<1x8x32xf32>
      %97 = arith.subf %91, %96 : vector<1x8x32xf32>
      %98 = arith.mulf %97, %97 : vector<1x8x32xf32>
      %cst_42 = arith.constant dense<0.000000e+00> : vector<1x8xf32>
      %99 = vector.multi_reduction <add>, %98, %cst_42 [2] : vector<1x8x32xf32> to vector<1x8xf32>
      %100 = vector.shape_cast %99 : vector<1x8xf32> to vector<1x8x1xf32>
      %cst_43 = arith.constant 3.200000e+01 : f32
      %101 = vector.broadcast %cst_43 : f32 to vector<1x8x1xf32>
      %102 = arith.divf %100, %101 : vector<1x8x1xf32>
      %cst_44 = arith.constant 9.99999974E-6 : f32
      %103 = vector.broadcast %cst_44 : f32 to vector<1x8x1xf32>
      %104 = arith.addf %102, %103 : vector<1x8x1xf32>
      %105 = math.rsqrt %104 : vector<1x8x1xf32>
      %106 = vector.broadcast %105 : vector<1x8x1xf32> to vector<1x8x32xf32>
      %107 = arith.mulf %97, %106 : vector<1x8x32xf32>
      %108 = vector.shape_cast %29 : vector<32xf32> to vector<1x1x32xf32>
      %109 = vector.broadcast %108 : vector<1x1x32xf32> to vector<1x8x32xf32>
      %110 = arith.mulf %107, %109 : vector<1x8x32xf32>
      %111 = vector.shape_cast %31 : vector<32xf32> to vector<1x1x32xf32>
      %112 = vector.broadcast %111 : vector<1x1x32xf32> to vector<1x8x32xf32>
      %113 = arith.addf %110, %112 : vector<1x8x32xf32>
      %c0_45 = arith.constant 0 : index
      %c0_46 = arith.constant 0 : index
      %c0_47 = arith.constant 0 : index
      %114 = vector.load %arg7[%c0_45, %c0_46, %c0_47] : memref<1x8x32xf32, #tpu.memory_space<vmem>>, vector<1x8x32xf32>
      tpu.vector_store %arg7[%c0_45, %c0_46, %c0_47], %113 {strides = array<i32>} : memref<1x8x32xf32, #tpu.memory_space<vmem>>, vector<1x8x32xf32>,
    } else {
    }
    return
  }
  func.func @transform_0(%arg0: i32, %arg1: i32) -> (i32, i32, i32) {
    %c0_i32 = arith.constant 0 : i32
    %c0_i32_0 = arith.constant 0 : i32
    %c0_i32_1 = arith.constant 0 : i32
    return %arg0, %c0_i32, %c0_i32_0 : i32, i32, i32
  }
  func.func @transform_1(%arg0: i32, %arg1: i32) -> (i32, i32, i32) {
    %c0_i32 = arith.constant 0 : i32
    %c0_i32_0 = arith.constant 0 : i32
    %c0_i32_1 = arith.constant 0 : i32
    %c0_i32_2 = arith.constant 0 : i32
    return %c0_i32, %c0_i32_0, %c0_i32_1 : i32, i32, i32
  }
  func.func @transform_2(%arg0: i32, %arg1: i32) -> (i32, i32, i32) {
    %c0_i32 = arith.constant 0 : i32
    %c0_i32_0 = arith.constant 0 : i32
    %c0_i32_1 = arith.constant 0 : i32
    return %arg1, %c0_i32, %c0_i32_0 : i32, i32, i32
  }
  func.func @transform_3(%arg0: i32, %arg1: i32) -> (i32, i32) {
    %c0_i32 = arith.constant 0 : i32
    %c0_i32_0 = arith.constant 0 : i32
    %c0_i32_1 = arith.constant 0 : i32
    return %c0_i32, %c0_i32_0 : i32, i32
  }
  func.func @transform_4(%arg0: i32, %arg1: i32) -> (i32, i32) {
    %c0_i32 = arith.constant 0 : i32
    %c0_i32_0 = arith.constant 0 : i32
    %c0_i32_1 = arith.constant 0 : i32
    return %c0_i32, %c0_i32_0 : i32, i32
  }
  func.func @transform_5(%arg0: i32, %arg1: i32) -> (i32, i32, i32) {
    %c0_i32 = arith.constant 0 : i32
    %c0_i32_0 = arith.constant 0 : i32
    %c0_i32_1 = arith.constant 0 : i32
    return %arg0, %c0_i32, %c0_i32_0 : i32, i32, i32
  }
}

module attributes {stable_mosaic.version = 11 : i64} {
  func.func @_merge_ff_kernel(%arg0: i32, %arg1: memref<16x32xf32, #tpu.memory_space<vmem>>, %arg2: memref<32x32xf32, #tpu.memory_space<vmem>>, %arg3: memref<32x128xf32, #tpu.memory_space<vmem>>, %arg4: memref<1x128xf32, #tpu.memory_space<vmem>>, %arg5: memref<128x32xf32, #tpu.memory_space<vmem>>, %arg6: memref<8x32xf32, #tpu.memory_space<vmem>>, %arg7: memref<16x32xf32, #tpu.memory_space<vmem>>) attributes {dimension_semantics = [#tpu.dimension_semantics<parallel>], iteration_bounds = array<i64: 1>, scalar_prefetch = 0 : i64, scratch_operands = 0 : i64, tpu.core_type = #tpu.core_type<tc>, window_params = [{transform_indices = @transform_0, window_bounds = array<i64: 16, 32>}, {pipeline_mode = #tpu.pipeline_mode<synchronous>, transform_indices = @transform_1, window_bounds = array<i64: 32, 32>}, {pipeline_mode = #tpu.pipeline_mode<synchronous>, transform_indices = @transform_2, window_bounds = array<i64: 32, 128>}, {pipeline_mode = #tpu.pipeline_mode<synchronous>, transform_indices = @transform_3, window_bounds = array<i64: 1, 128>}, {pipeline_mode = #tpu.pipeline_mode<synchronous>, transform_indices = @transform_4, window_bounds = array<i64: 128, 32>}, {pipeline_mode = #tpu.pipeline_mode<synchronous>, transform_indices = @transform_5, window_bounds = array<i64: 8, 32>}, {transform_indices = @transform_6, window_bounds = array<i64: 16, 32>}]} {
    %c0 = arith.constant 0 : index
    %c0_0 = arith.constant 0 : index
    %0 = vector.load %arg1[%c0, %c0_0] : memref<16x32xf32, #tpu.memory_space<vmem>>, vector<16x32xf32>
    %c0_1 = arith.constant 0 : index
    %c0_2 = arith.constant 0 : index
    %1 = vector.load %arg2[%c0_1, %c0_2] : memref<32x32xf32, #tpu.memory_space<vmem>>, vector<32x32xf32>
    %cst = arith.constant dense<0.000000e+00> : vector<16x32xf32>
    %2 = tpu.matmul %0, %1, %cst {dimension_numbers = #tpu.dot_dimension_numbers<[1], [0], [0], [1], [0, 0, 1, 1], [], []>} : vector<16x32xf32>, vector<32x32xf32>, vector<16x32xf32> -> vector<16x32xf32>
    %c0_3 = arith.constant 0 : index
    %c0_4 = arith.constant 0 : index
    %3 = vector.load %arg6[%c0_3, %c0_4] : memref<8x32xf32, #tpu.memory_space<vmem>>, vector<1x32xf32>
    %4 = vector.shape_cast %3 : vector<1x32xf32> to vector<32xf32>
    %5 = vector.shape_cast %4 : vector<32xf32> to vector<1x32xf32>
    %6 = vector.broadcast %5 : vector<1x32xf32> to vector<16x32xf32>
    %7 = arith.addf %2, %6 : vector<16x32xf32>
    %c1 = arith.constant 1 : index
    %c0_5 = arith.constant 0 : index
    %8 = vector.load %arg6[%c1, %c0_5] : memref<8x32xf32, #tpu.memory_space<vmem>>, vector<1x32xf32>
    %9 = vector.shape_cast %8 : vector<1x32xf32> to vector<32xf32>
    %c2 = arith.constant 2 : index
    %c0_6 = arith.constant 0 : index
    %10 = vector.load %arg6[%c2, %c0_6] : memref<8x32xf32, #tpu.memory_space<vmem>>, vector<1x32xf32>
    %11 = vector.shape_cast %10 : vector<1x32xf32> to vector<32xf32>
    %cst_7 = arith.constant dense<0.000000e+00> : vector<16xf32>
    %12 = vector.multi_reduction <add>, %7, %cst_7 [1] : vector<16x32xf32> to vector<16xf32>
    %13 = vector.shape_cast %12 : vector<16xf32> to vector<16x1xf32>
    %cst_8 = arith.constant 3.200000e+01 : f32
    %14 = vector.broadcast %cst_8 : f32 to vector<16x1xf32>
    %15 = arith.divf %13, %14 : vector<16x1xf32>
    %16 = vector.broadcast %15 : vector<16x1xf32> to vector<16x32xf32>
    %17 = arith.subf %7, %16 : vector<16x32xf32>
    %18 = arith.mulf %17, %17 : vector<16x32xf32>
    %cst_9 = arith.constant dense<0.000000e+00> : vector<16xf32>
    %19 = vector.multi_reduction <add>, %18, %cst_9 [1] : vector<16x32xf32> to vector<16xf32>
    %20 = vector.shape_cast %19 : vector<16xf32> to vector<16x1xf32>
    %cst_10 = arith.constant 3.200000e+01 : f32
    %21 = vector.broadcast %cst_10 : f32 to vector<16x1xf32>
    %22 = arith.divf %20, %21 : vector<16x1xf32>
    %cst_11 = arith.constant 9.99999974E-6 : f32
    %23 = vector.broadcast %cst_11 : f32 to vector<16x1xf32>
    %24 = arith.addf %22, %23 : vector<16x1xf32>
    %25 = math.rsqrt %24 : vector<16x1xf32>
    %26 = vector.broadcast %25 : vector<16x1xf32> to vector<16x32xf32>
    %27 = arith.mulf %17, %26 : vector<16x32xf32>
    %28 = vector.shape_cast %9 : vector<32xf32> to vector<1x32xf32>
    %29 = vector.broadcast %28 : vector<1x32xf32> to vector<16x32xf32>
    %30 = arith.mulf %27, %29 : vector<16x32xf32>
    %31 = vector.shape_cast %11 : vector<32xf32> to vector<1x32xf32>
    %32 = vector.broadcast %31 : vector<1x32xf32> to vector<16x32xf32>
    %33 = arith.addf %30, %32 : vector<16x32xf32>
    %c0_12 = arith.constant 0 : index
    %c0_13 = arith.constant 0 : index
    %34 = vector.load %arg3[%c0_12, %c0_13] : memref<32x128xf32, #tpu.memory_space<vmem>>, vector<32x128xf32>
    %cst_14 = arith.constant dense<0.000000e+00> : vector<16x128xf32>
    %35 = tpu.matmul %33, %34, %cst_14 {dimension_numbers = #tpu.dot_dimension_numbers<[1], [0], [0], [1], [0, 0, 1, 1], [], []>} : vector<16x32xf32>, vector<32x128xf32>, vector<16x128xf32> -> vector<16x128xf32>
    %c0_15 = arith.constant 0 : index
    %c0_16 = arith.constant 0 : index
    %36 = vector.load %arg4[%c0_15, %c0_16] : memref<1x128xf32, #tpu.memory_space<vmem>>, vector<1x128xf32>
    %37 = vector.broadcast %36 : vector<1x128xf32> to vector<16x128xf32>
    %38 = arith.addf %35, %37 : vector<16x128xf32>
    %c0_17 = arith.constant 0 : index
    %c0_18 = arith.constant 0 : index
    %39 = vector.load %arg5[%c0_17, %c0_18] : memref<128x32xf32, #tpu.memory_space<vmem>>, vector<128x32xf32>
    %cst_19 = arith.constant dense<0.000000e+00> : vector<16x32xf32>
    %40 = tpu.matmul %38, %39, %cst_19 {dimension_numbers = #tpu.dot_dimension_numbers<[1], [0], [0], [1], [0, 0, 1, 1], [], []>} : vector<16x128xf32>, vector<128x32xf32>, vector<16x32xf32> -> vector<16x32xf32>
    %c3 = arith.constant 3 : index
    %c0_20 = arith.constant 0 : index
    %41 = vector.load %arg6[%c3, %c0_20] : memref<8x32xf32, #tpu.memory_space<vmem>>, vector<1x32xf32>
    %42 = vector.shape_cast %41 : vector<1x32xf32> to vector<32xf32>
    %43 = vector.shape_cast %42 : vector<32xf32> to vector<1x32xf32>
    %44 = vector.broadcast %43 : vector<1x32xf32> to vector<16x32xf32>
    %45 = arith.addf %40, %44 : vector<16x32xf32>
    %46 = arith.addf %7, %45 : vector<16x32xf32>
    %c4 = arith.constant 4 : index
    %c0_21 = arith.constant 0 : index
    %47 = vector.load %arg6[%c4, %c0_21] : memref<8x32xf32, #tpu.memory_space<vmem>>, vector<1x32xf32>
    %48 = vector.shape_cast %47 : vector<1x32xf32> to vector<32xf32>
    %c5 = arith.constant 5 : index
    %c0_22 = arith.constant 0 : index
    %49 = vector.load %arg6[%c5, %c0_22] : memref<8x32xf32, #tpu.memory_space<vmem>>, vector<1x32xf32>
    %50 = vector.shape_cast %49 : vector<1x32xf32> to vector<32xf32>
    %cst_23 = arith.constant dense<0.000000e+00> : vector<16xf32>
    %51 = vector.multi_reduction <add>, %46, %cst_23 [1] : vector<16x32xf32> to vector<16xf32>
    %52 = vector.shape_cast %51 : vector<16xf32> to vector<16x1xf32>
    %cst_24 = arith.constant 3.200000e+01 : f32
    %53 = vector.broadcast %cst_24 : f32 to vector<16x1xf32>
    %54 = arith.divf %52, %53 : vector<16x1xf32>
    %55 = vector.broadcast %54 : vector<16x1xf32> to vector<16x32xf32>
    %56 = arith.subf %46, %55 : vector<16x32xf32>
    %57 = arith.mulf %56, %56 : vector<16x32xf32>
    %cst_25 = arith.constant dense<0.000000e+00> : vector<16xf32>
    %58 = vector.multi_reduction <add>, %57, %cst_25 [1] : vector<16x32xf32> to vector<16xf32>
    %59 = vector.shape_cast %58 : vector<16xf32> to vector<16x1xf32>
    %cst_26 = arith.constant 3.200000e+01 : f32
    %60 = vector.broadcast %cst_26 : f32 to vector<16x1xf32>
    %61 = arith.divf %59, %60 : vector<16x1xf32>
    %cst_27 = arith.constant 9.99999974E-6 : f32
    %62 = vector.broadcast %cst_27 : f32 to vector<16x1xf32>
    %63 = arith.addf %61, %62 : vector<16x1xf32>
    %64 = math.rsqrt %63 : vector<16x1xf32>
    %65 = vector.broadcast %64 : vector<16x1xf32> to vector<16x32xf32>
    %66 = arith.mulf %56, %65 : vector<16x32xf32>
    %67 = vector.shape_cast %48 : vector<32xf32> to vector<1x32xf32>
    %68 = vector.broadcast %67 : vector<1x32xf32> to vector<16x32xf32>
    %69 = arith.mulf %66, %68 : vector<16x32xf32>
    %70 = vector.shape_cast %50 : vector<32xf32> to vector<1x32xf32>
    %71 = vector.broadcast %70 : vector<1x32xf32> to vector<16x32xf32>
    %72 = arith.addf %69, %71 : vector<16x32xf32>
    %c0_28 = arith.constant 0 : index
    %c0_29 = arith.constant 0 : index
    %73 = vector.load %arg7[%c0_28, %c0_29] : memref<16x32xf32, #tpu.memory_space<vmem>>, vector<16x32xf32>
    tpu.vector_store %arg7[%c0_28, %c0_29], %72 {strides = array<i32>} : memref<16x32xf32, #tpu.memory_space<vmem>>, vector<16x32xf32>,
    return
  }
  func.func @transform_0(%arg0: i32) -> (i32, i32) {
    %c0_i32 = arith.constant 0 : i32
    %c0_i32_0 = arith.constant 0 : i32
    return %arg0, %c0_i32 : i32, i32
  }
  func.func @transform_1(%arg0: i32) -> (i32, i32) {
    %c0_i32 = arith.constant 0 : i32
    %c0_i32_0 = arith.constant 0 : i32
    %c0_i32_1 = arith.constant 0 : i32
    return %c0_i32, %c0_i32_0 : i32, i32
  }
  func.func @transform_2(%arg0: i32) -> (i32, i32) {
    %c0_i32 = arith.constant 0 : i32
    %c0_i32_0 = arith.constant 0 : i32
    %c0_i32_1 = arith.constant 0 : i32
    return %c0_i32, %c0_i32_0 : i32, i32
  }
  func.func @transform_3(%arg0: i32) -> (i32, i32) {
    %c0_i32 = arith.constant 0 : i32
    %c0_i32_0 = arith.constant 0 : i32
    %c0_i32_1 = arith.constant 0 : i32
    return %c0_i32, %c0_i32_0 : i32, i32
  }
  func.func @transform_4(%arg0: i32) -> (i32, i32) {
    %c0_i32 = arith.constant 0 : i32
    %c0_i32_0 = arith.constant 0 : i32
    %c0_i32_1 = arith.constant 0 : i32
    return %c0_i32, %c0_i32_0 : i32, i32
  }
  func.func @transform_5(%arg0: i32) -> (i32, i32) {
    %c0_i32 = arith.constant 0 : i32
    %c0_i32_0 = arith.constant 0 : i32
    %c0_i32_1 = arith.constant 0 : i32
    return %c0_i32, %c0_i32_0 : i32, i32
  }
  func.func @transform_6(%arg0: i32) -> (i32, i32) {
    %c0_i32 = arith.constant 0 : i32
    %c0_i32_0 = arith.constant 0 : i32
    return %arg0, %c0_i32 : i32, i32
  }
}

</mosaic_0001>

<llo_original>
// kernel: mic_forward.3
$region0: #{mic_forward.3}
  #allocation0 [shape = 'u32[]', space=smem, size = 0x4, offset = 0x4, fixed_abs, tag = 'smem constant byte address 0x4 - core index']
  #allocation1 [shape = 'u32[144,128]{1,0:T(1,128)}', space=vmem, size = 0x12000, scoped, tag = 'internal scratch']
  %s0 = inlined_call_operand.vmem [shape: f32[16,32], index: 0, kind: input, shape index: {}]
  %s1 = inlined_call_operand.vmem [shape: f32[32,32], index: 1, kind: input, shape index: {}]
  %s2 = inlined_call_operand.vmem [shape: f32[32,128], index: 2, kind: input, shape index: {}]
  %s3 = inlined_call_operand.vmem [shape: f32[1,128], index: 3, kind: input, shape index: {}]
  %s4 = inlined_call_operand.vmem [shape: f32[128,32], index: 4, kind: input, shape index: {}]
  %s5 = inlined_call_operand.vmem [shape: f32[8,32], index: 5, kind: input, shape index: {}]
  %s6 = inlined_call_operand.hbm [shape: f32[16,32], index: 6, kind: output, shape index: {}]
  %s7 = sld [smem:[#allocation0]]
  $region34: #{mic_forward.3} parent=0
    _
  %s9 = ssub.s32 1, %s7
  %s10 = scalar_select 0, %s9, %s7
  $region1: #{mic_forward.3} parent=0
    #allocation2 [shape = 'u8[8192]{0}', space=vmem, size = 0x2000, scoped, tag = 'output window, operand 0, single buffered']
    #allocation3 [shape = 's32[1]{0}', space=sflag, size = 0x4, scoped, tag = 'scoped memory for mic_forward.3']
    %11 = vsyncpa [#allocation3], 0
    // Predicated region
    $region2: #{mic_forward.3} parent=1 // pred_check
      _
    $region3: #{mic_forward.3} parent=1 // pred_check_branch
      %13 = sbr.rel (0) target = $region5
    $region4: #{mic_forward.3} parent=1 // pred_region
      _
    $region5: #{mic_forward.3} parent=1 // pred_fallthru
      _
    // Predicated region
    $region6: #{mic_forward.3} parent=1 // pred_check
      _
    $region7: #{mic_forward.3} parent=1 // pred_check_branch
      %15 = sbr.rel (0) target = $region9
    $region8: #{mic_forward.3} parent=1 // pred_region
      _
    $region9: #{mic_forward.3} parent=1 // pred_fallthru
      _
    // Predicated region
    $region10: #{mic_forward.3} parent=1 // pred_check
      _
    $region11: #{mic_forward.3} parent=1 // pred_check_branch
      %17 = sbr.rel (0) target = $region13
    $region12: #{mic_forward.3} parent=1 // pred_region
      _
    $region13: #{mic_forward.3} parent=1 // pred_fallthru
      _
    // Predicated region
    $region14: #{mic_forward.3} parent=1 // pred_check
      _
    $region15: #{mic_forward.3} parent=1 // pred_check_branch
      %19 = sbr.rel (0) target = $region17
    $region16: #{mic_forward.3} parent=1 // pred_region
      _
    $region17: #{mic_forward.3} parent=1 // pred_fallthru
      _
    // Predicated region
    $region18: #{mic_forward.3} parent=1 // pred_check
      _
    $region19: #{mic_forward.3} parent=1 // pred_check_branch
      %21 = sbr.rel (0) target = $region21
    $region20: #{mic_forward.3} parent=1 // pred_region
      _
    $region21: #{mic_forward.3} parent=1 // pred_fallthru
      _
    // Predicated region
    $region22: #{mic_forward.3} parent=1 // pred_check
      _
    $region23: #{mic_forward.3} parent=1 // pred_check_branch
      %23 = sbr.rel (0) target = $region25
    $region24: #{mic_forward.3} parent=1 // pred_region
      _
    $region25: #{mic_forward.3} parent=1 // pred_fallthru
      _
    %v24 = vld [vmem:[%s0] sm:$0xff]
    %v25 = vld [vmem:[%s0 + $0x8] sm:$0xff]
    %v26 = vld [vmem:[%s1] sm:$0xff]
    %v27 = vld [vmem:[%s1 + $0x8] sm:$0xff]
    %v28 = vld [vmem:[%s1 + $0x10] sm:$0xff]
    %v29 = vld [vmem:[%s1 + $0x18] sm:$0xff]
    %v30 = vld [vmem:[%s5] sm:$0x1]
    %v31 = vlaneseq
    %v32 = vshrl.u32 %v31, 7
    %v33 = vsub.s32 0, %v32
    %v34 = vrot.slane %v30, %v33
    %vm35 = vcmask 261120
    %v37 = vsel %vm35, %v24, 0
    %v40 = vsel %vm35, %v25, 0
    %42 = vmatprep.subr.mxu0 0.0
    %43 = vmatpush1.msra.mxu0 %v26
    %44 = vmatprep.subr.mxu0 0.0
    %45 = vmatpush1.msra.mxu0 %v27
    %46 = vmatprep.subr.mxu0 0.0
    %47 = vmatpush1.msra.mxu0 %v28
    %48 = vmatprep.subr.mxu0 0.0
    %49 = vmatpush1.msra.mxu0 %v29
    %50 = vmatprep.subr.mxu0 0.0
    %51 = vmatpush1.msra.mxu0 0.0
    %52 = vmatprep.subr.mxu0 0.0
    %53 = vmatpush1.msra.mxu0 0.0
    %54 = vmatprep.subr.mxu0 0.0
    %55 = vmatpush1.msra.mxu0 0.0
    %56 = vmatprep.subr.mxu0 0.0
    %57 = vmatpush1.msra.mxu0 0.0
    %58 = vmatprep.subr.mxu0 0.0
    %59 = vmatpush1.msra.mxu0 0.0
    %60 = vmatprep.subr.mxu0 0.0
    %61 = vmatpush1.msra.mxu0 0.0
    %62 = vmatprep.subr.mxu0 0.0
    %63 = vmatpush1.msra.mxu0 0.0
    %64 = vmatprep.subr.mxu0 0.0
    %65 = vmatpush1.msra.mxu0 0.0
    %66 = vmatprep.subr.mxu0 0.0
    %67 = vmatpush1.msra.mxu0 0.0
    %68 = vmatprep.subr.mxu0 0.0
    %69 = vmatpush1.msra.mxu0 0.0
    %70 = vmatprep.subr.mxu0 0.0
    %71 = vmatpush1.msra.mxu0 0.0
    %72 = vmatprep.subr.mxu0 0.0
    %73 = vmatpush1.msra.mxu0 0.0
    %74 = vmatprep.subr.mxu0 0.0
    %75 = vmatpush1.msra.mxu0 0.0
    %76 = vmatprep.subr.mxu0 0.0
    %77 = vmatpush1.msra.mxu0 0.0
    %78 = vmatprep.subr.mxu0 0.0
    %79 = vmatpush1.msra.mxu0 0.0
    %80 = vmatprep.subr.mxu0 0.0
    %81 = vmatpush1.msra.mxu0 0.0
    %82 = vmatprep.subr.mxu0 0.0
    %83 = vmatpush1.msra.mxu0 0.0
    %84 = vmatprep.subr.mxu0 0.0
    %85 = vmatpush1.msra.mxu0 0.0
    %86 = vmatprep.subr.mxu0 0.0
    %87 = vmatpush1.msra.mxu0 0.0
    %88 = vmatprep.subr.mxu0 0.0
    %89 = vmatpush1.msra.mxu0 0.0
    %90 = vmatprep.subr.mxu0 0.0
    %91 = vmatpush1.msra.mxu0 0.0
    %92 = vmatprep.subr.mxu0 0.0
    %93 = vmatpush1.msra.mxu0 0.0
    %94 = vmatprep.subr.mxu0 0.0
    %95 = vmatpush1.msra.mxu0 0.0
    %96 = vmatprep.subr.mxu0 0.0
    %97 = vmatpush1.msra.mxu0 0.0
    %98 = vmatprep.subr.mxu0 0.0
    %99 = vmatpush1.msra.mxu0 0.0
    %100 = vmatprep.subr.mxu0 0.0
    %101 = vmatpush1.msra.mxu0 0.0
    %102 = vmatprep.subr.mxu0 0.0
    %103 = vmatpush1.msra.mxu0 0.0
    %104 = vmatprep.subr.mxu0 0.0
    %105 = vmatpush1.msra.mxu0 0.0
    %106 = vmatprep.mubr.f32.mxu0 0.0
    %107 = vmatmul.mubr.f32.gmra.mrb[0].mxu0 %v37
    %v108 = vpop.f32.mrb[0].mxu0
    %v109 = vadd.f32 %v34, %v108
    %v110 = vpop.f32.mrb[0].mxu0
    %111 = vmatprep.mubr.f32.mxu0 0.0
    %112 = vmatmul.mubr.f32.gmra.mrb[0].mxu0 %v40
    %v113 = vpop.f32.mrb[0].mxu0
    %v114 = vadd.f32 %v34, %v113
    %v115 = vpop.f32.mrb[0].mxu0
    %116 = vdwg.mxu0
    %v117 = vld [vmem:[%s5 + $0x1] sm:$0x1]
    %v118 = vld [vmem:[%s5 + $0x2] sm:$0x1]
    %v119 = vsel %vm35, %v109, 0.0
    %120 = vadd.xlane.f32.xlu0 %v119
    %v121 = vpop.xlane.xlu0 %120
    %v122 = vsel %vm35, %v114, 0.0
    %123 = vadd.xlane.f32.xlu0 %v122
    %v124 = vpop.xlane.xlu0 %123
    %v125 = vrcp.pop 32.0
    %v126 = vmul.f32 %v121, %v125
    %v127 = vmul.f32 %v124, %v125
    %v128 = vsub.f32 %v109, %v126
    %v129 = vsub.f32 %v114, %v127
    %v130 = vmul.f32 %v128, %v128
    %v131 = vmul.f32 %v129, %v129
    %v132 = vsel %vm35, %v130, 0.0
    %133 = vadd.xlane.f32.xlu0 %v132
    %v134 = vpop.xlane.xlu0 %133
    %v135 = vsel %vm35, %v131, 0.0
    %136 = vadd.xlane.f32.xlu0 %v135
    %v137 = vpop.xlane.xlu0 %136
    %v138 = vmul.f32 %v134, %v125
    %v139 = vmul.f32 %v137, %v125
    %v140 = vadd.f32 %v138, 1e-05
    %v141 = vadd.f32 %v139, 1e-05
    %v142 = vrsqrt.pop %v140
    %v143 = vrsqrt.pop %v141
    %v144 = vmul.f32 %v128, %v142
    %v145 = vmul.f32 %v129, %v143
    %v146 = vlaneseq
    %v147 = vshrl.u32 %v146, 7
    %v148 = vsub.s32 0, %v147
    %v149 = vrot.slane %v117, %v148
    %v150 = vmul.f32 %v144, %v149
    %v151 = vmul.f32 %v145, %v149
    %v152 = vlaneseq
    %v153 = vshrl.u32 %v152, 7
    %v154 = vsub.s32 0, %v153
    %v155 = vrot.slane %v118, %v154
    %v156 = vadd.f32 %v150, %v155
    %v157 = vadd.f32 %v151, %v155
    %v158 = vld [vmem:[%s2] sm:$0xff]
    %v159 = vld [vmem:[%s2 + $0x8] sm:$0xff]
    %v160 = vld [vmem:[%s2 + $0x10] sm:$0xff]
    %v161 = vld [vmem:[%s2 + $0x18] sm:$0xff]
    %v162 = vld [vmem:[%s3] sm:$0x1]
    %v164 = vlaneseq
    %v165 = vshrl.u32 %v164, 7
    %v166 = vsub.s32 0, %v165
    %v167 = vrot.slane %v162, %v166
    %v170 = vsel %vm35, %v156, 0
    %v173 = vsel %vm35, %v157, 0
    %175 = vmatprep.subr.mxu0 0.0
    %176 = vmatpush1.msra.mxu0 %v158
    %177 = vmatprep.subr.mxu0 0.0
    %178 = vmatpush1.msra.mxu0 %v159
    %179 = vmatprep.subr.mxu0 0.0
    %180 = vmatpush1.msra.mxu0 %v160
    %181 = vmatprep.subr.mxu0 0.0
    %182 = vmatpush1.msra.mxu0 %v161
    %183 = vmatprep.subr.mxu0 0.0
    %184 = vmatpush1.msra.mxu0 0.0
    %185 = vmatprep.subr.mxu0 0.0
    %186 = vmatpush1.msra.mxu0 0.0
    %187 = vmatprep.subr.mxu0 0.0
    %188 = vmatpush1.msra.mxu0 0.0
    %189 = vmatprep.subr.mxu0 0.0
    %190 = vmatpush1.msra.mxu0 0.0
    %191 = vmatprep.subr.mxu0 0.0
    %192 = vmatpush1.msra.mxu0 0.0
    %193 = vmatprep.subr.mxu0 0.0
    %194 = vmatpush1.msra.mxu0 0.0
    %195 = vmatprep.subr.mxu0 0.0
    %196 = vmatpush1.msra.mxu0 0.0
    %197 = vmatprep.subr.mxu0 0.0
    %198 = vmatpush1.msra.mxu0 0.0
    %199 = vmatprep.subr.mxu0 0.0
    %200 = vmatpush1.msra.mxu0 0.0
    %201 = vmatprep.subr.mxu0 0.0
    %202 = vmatpush1.msra.mxu0 0.0
    %203 = vmatprep.subr.mxu0 0.0
    %204 = vmatpush1.msra.mxu0 0.0
    %205 = vmatprep.subr.mxu0 0.0
    %206 = vmatpush1.msra.mxu0 0.0
    %207 = vmatprep.subr.mxu0 0.0
    %208 = vmatpush1.msra.mxu0 0.0
    %209 = vmatprep.subr.mxu0 0.0
    %210 = vmatpush1.msra.mxu0 0.0
    %211 = vmatprep.subr.mxu0 0.0
    %212 = vmatpush1.msra.mxu0 0.0
    %213 = vmatprep.subr.mxu0 0.0
    %214 = vmatpush1.msra.mxu0 0.0
    %215 = vmatprep.subr.mxu0 0.0
    %216 = vmatpush1.msra.mxu0 0.0
    %217 = vmatprep.subr.mxu0 0.0
    %218 = vmatpush1.msra.mxu0 0.0
    %219 = vmatprep.subr.mxu0 0.0
    %220 = vmatpush1.msra.mxu0 0.0
    %221 = vmatprep.subr.mxu0 0.0
    %222 = vmatpush1.msra.mxu0 0.0
    %223 = vmatprep.subr.mxu0 0.0
    %224 = vmatpush1.msra.mxu0 0.0
    %225 = vmatprep.subr.mxu0 0.0
    %226 = vmatpush1.msra.mxu0 0.0
    %227 = vmatprep.subr.mxu0 0.0
    %228 = vmatpush1.msra.mxu0 0.0
    %229 = vmatprep.subr.mxu0 0.0
    %230 = vmatpush1.msra.mxu0 0.0
    %231 = vmatprep.subr.mxu0 0.0
    %232 = vmatpush1.msra.mxu0 0.0
    %233 = vmatprep.subr.mxu0 0.0
    %234 = vmatpush1.msra.mxu0 0.0
    %235 = vmatprep.subr.mxu0 0.0
    %236 = vmatpush1.msra.mxu0 0.0
    %237 = vmatprep.subr.mxu0 0.0
    %238 = vmatpush1.msra.mxu0 0.0
    %239 = vmatprep.mubr.f32.mxu0 0.0
    %240 = vmatmul.mubr.f32.gmra.mrb[0].mxu0 %v170
    %v241 = vpop.f32.mrb[0].mxu0
    %v242 = vadd.f32 %v167, %v241
    %v243 = vpop.f32.mrb[0].mxu0
    %244 = vmatprep.mubr.f32.mxu0 0.0
    %245 = vmatmul.mubr.f32.gmra.mrb[0].mxu0 %v173
    %v246 = vpop.f32.mrb[0].mxu0
    %v247 = vadd.f32 %v167, %v246
    %v248 = vpop.f32.mrb[0].mxu0
    %249 = vdwg.mxu0
    %v250 = vld [vmem:[%s4] sm:$0xff]
    %v251 = vld [vmem:[%s4 + $0x8] sm:$0xff]
    %v252 = vld [vmem:[%s4 + $0x10] sm:$0xff]
    %v253 = vld [vmem:[%s4 + $0x18] sm:$0xff]
    %v254 = vld [vmem:[%s4 + $0x20] sm:$0xff]
    %v255 = vld [vmem:[%s4 + $0x28] sm:$0xff]
    %v256 = vld [vmem:[%s4 + $0x30] sm:$0xff]
    %v257 = vld [vmem:[%s4 + $0x38] sm:$0xff]
    %v258 = vld [vmem:[%s4 + $0x40] sm:$0xff]
    %v259 = vld [vmem:[%s4 + $0x48] sm:$0xff]
    %v260 = vld [vmem:[%s4 + $0x50] sm:$0xff]
    %v261 = vld [vmem:[%s4 + $0x58] sm:$0xff]
    %v262 = vld [vmem:[%s4 + $0x60] sm:$0xff]
    %v263 = vld [vmem:[%s4 + $0x68] sm:$0xff]
    %v264 = vld [vmem:[%s4 + $0x70] sm:$0xff]
    %v265 = vld [vmem:[%s4 + $0x78] sm:$0xff]
    %v266 = vld [vmem:[%s5 + $0x3] sm:$0x1]
    %v267 = vlaneseq
    %v268 = vshrl.u32 %v267, 7
    %v269 = vsub.s32 0, %v268
    %v270 = vrot.slane %v266, %v269
    %271 = vmatprep.subr.mxu0 0.0
    %272 = vmatpush1.msra.mxu0 %v250
    %273 = vmatprep.subr.mxu0 0.0
    %274 = vmatpush1.msra.mxu0 %v251
    %275 = vmatprep.subr.mxu0 0.0
    %276 = vmatpush1.msra.mxu0 %v252
    %277 = vmatprep.subr.mxu0 0.0
    %278 = vmatpush1.msra.mxu0 %v253
    %279 = vmatprep.subr.mxu0 0.0
    %280 = vmatpush1.msra.mxu0 %v254
    %281 = vmatprep.subr.mxu0 0.0
    %282 = vmatpush1.msra.mxu0 %v255
    %283 = vmatprep.subr.mxu0 0.0
    %284 = vmatpush1.msra.mxu0 %v256
    %285 = vmatprep.subr.mxu0 0.0
    %286 = vmatpush1.msra.mxu0 %v257
    %287 = vmatprep.subr.mxu0 0.0
    %288 = vmatpush1.msra.mxu0 %v258
    %289 = vmatprep.subr.mxu0 0.0
    %290 = vmatpush1.msra.mxu0 %v259
    %291 = vmatprep.subr.mxu0 0.0
    %292 = vmatpush1.msra.mxu0 %v260
    %293 = vmatprep.subr.mxu0 0.0
    %294 = vmatpush1.msra.mxu0 %v261
    %295 = vmatprep.subr.mxu0 0.0
    %296 = vmatpush1.msra.mxu0 %v262
    %297 = vmatprep.subr.mxu0 0.0
    %298 = vmatpush1.msra.mxu0 %v263
    %299 = vmatprep.subr.mxu0 0.0
    %300 = vmatpush1.msra.mxu0 %v264
    %301 = vmatprep.subr.mxu0 0.0
    %302 = vmatpush1.msra.mxu0 %v265
    %303 = vmatprep.subr.mxu0 0.0
    %304 = vmatpush1.msra.mxu0 0.0
    %305 = vmatprep.subr.mxu0 0.0
    %306 = vmatpush1.msra.mxu0 0.0
    %307 = vmatprep.subr.mxu0 0.0
    %308 = vmatpush1.msra.mxu0 0.0
    %309 = vmatprep.subr.mxu0 0.0
    %310 = vmatpush1.msra.mxu0 0.0
    %311 = vmatprep.subr.mxu0 0.0
    %312 = vmatpush1.msra.mxu0 0.0
    %313 = vmatprep.subr.mxu0 0.0
    %314 = vmatpush1.msra.mxu0 0.0
    %315 = vmatprep.subr.mxu0 0.0
    %316 = vmatpush1.msra.mxu0 0.0
    %317 = vmatprep.subr.mxu0 0.0
    %318 = vmatpush1.msra.mxu0 0.0
    %319 = vmatprep.subr.mxu0 0.0
    %320 = vmatpush1.msra.mxu0 0.0
    %321 = vmatprep.subr.mxu0 0.0
    %322 = vmatpush1.msra.mxu0 0.0
    %323 = vmatprep.subr.mxu0 0.0
    %324 = vmatpush1.msra.mxu0 0.0
    %325 = vmatprep.subr.mxu0 0.0
    %326 = vmatpush1.msra.mxu0 0.0
    %327 = vmatprep.subr.mxu0 0.0
    %328 = vmatpush1.msra.mxu0 0.0
    %329 = vmatprep.subr.mxu0 0.0
    %330 = vmatpush1.msra.mxu0 0.0
    %331 = vmatprep.subr.mxu0 0.0
    %332 = vmatpush1.msra.mxu0 0.0
    %333 = vmatprep.subr.mxu0 0.0
    %334 = vmatpush1.msra.mxu0 0.0
    %335 = vmatprep.mubr.f32.mxu0 0.0
    %336 = vmatmul.mubr.f32.gmra.mrb[0].mxu0 %v242
    %v337 = vpop.f32.mrb[0].mxu0
    %v338 = vadd.f32 %v270, %v337
    %v339 = vpop.f32.mrb[0].mxu0
    %340 = vmatprep.mubr.f32.mxu0 0.0
    %341 = vmatmul.mubr.f32.gmra.mrb[0].mxu0 %v247
    %v342 = vpop.f32.mrb[0].mxu0
    %v343 = vadd.f32 %v270, %v342
    %v344 = vpop.f32.mrb[0].mxu0
    %345 = vdwg.mxu0
    %v346 = vadd.f32 %v109, %v338
    %v347 = vadd.f32 %v114, %v343
    %v348 = vld [vmem:[%s5 + $0x4] sm:$0x1]
    %v349 = vld [vmem:[%s5 + $0x5] sm:$0x1]
    %v350 = vsel %vm35, %v346, 0.0
    %351 = vadd.xlane.f32.xlu0 %v350
    %v352 = vpop.xlane.xlu0 %351
    %v353 = vsel %vm35, %v347, 0.0
    %354 = vadd.xlane.f32.xlu0 %v353
    %v355 = vpop.xlane.xlu0 %354
    %v356 = vmul.f32 %v352, %v125
    %v357 = vmul.f32 %v355, %v125
    %v358 = vsub.f32 %v346, %v356
    %v359 = vsub.f32 %v347, %v357
    %v360 = vmul.f32 %v358, %v358
    %v361 = vmul.f32 %v359, %v359
    %v362 = vsel %vm35, %v360, 0.0
    %363 = vadd.xlane.f32.xlu0 %v362
    %v364 = vpop.xlane.xlu0 %363
    %v365 = vsel %vm35, %v361, 0.0
    %366 = vadd.xlane.f32.xlu0 %v365
    %v367 = vpop.xlane.xlu0 %366
    %v368 = vmul.f32 %v364, %v125
    %v369 = vmul.f32 %v367, %v125
    %v370 = vadd.f32 %v368, 1e-05
    %v371 = vadd.f32 %v369, 1e-05
    %v372 = vrsqrt.pop %v370
    %v373 = vrsqrt.pop %v371
    %v374 = vmul.f32 %v358, %v372
    %v375 = vmul.f32 %v359, %v373
    %v376 = vlaneseq
    %v377 = vshrl.u32 %v376, 7
    %v378 = vsub.s32 0, %v377
    %v379 = vrot.slane %v348, %v378
    %v380 = vmul.f32 %v374, %v379
    %v381 = vmul.f32 %v375, %v379
    %v382 = vlaneseq
    %v383 = vshrl.u32 %v382, 7
    %v384 = vsub.s32 0, %v383
    %v385 = vrot.slane %v349, %v384
    %v386 = vadd.f32 %v380, %v385
    %v387 = vadd.f32 %v381, %v385
    %388 = vst.msk [vmem:[#allocation2] sm:$0xff] %vm35, %v386
    %389 = vst.msk [vmem:[#allocation2 + $0x8] sm:$0xff] %vm35, %v387
    // Predicated region
    $region26: #{mic_forward.3} parent=1 // pred_check
      _
    $region27: #{mic_forward.3} parent=1 // pred_check_branch
      %391 = sbr.rel (0) target = $region29
    $region28: #{mic_forward.3} parent=1 // pred_region
      %s393 = ssub.s32 256, 256
      %394 = vsyncadd [#allocation3], %s393
      %s395 = sshll.u32 [#allocation2], 4
      %s396 = int_to_ptr.vmem [resolvable:$true] %s395
      %401 = dma.vmem_to_hbm [thread:$0]  %s396, 256, %s6, [#allocation3], 128, 128, 8
    $region29: #{mic_forward.3} parent=1 // pred_fallthru
      _
    // Predicated region
    $region30: #{mic_forward.3} parent=1 // pred_check
      _
    $region31: #{mic_forward.3} parent=1 // pred_check_branch
      %403 = sbr.rel (0) target = $region33
    $region32: #{mic_forward.3} parent=1 // pred_region
      %404 = dma.done [#allocation3], 256
    $region33: #{mic_forward.3} parent=1 // pred_fallthru
      _
    %405 = vsyncpa [#allocation3], 1

// kernel: mic_forward.2
$region0: #{mic_forward.2}
  #allocation0 [shape = 'u32[]', space=smem, size = 0x4, offset = 0x4, fixed_abs, tag = 'smem constant byte address 0x4 - core index']
  #allocation1 [shape = 'u32[144,128]{1,0:T(1,128)}', space=vmem, size = 0x12000, scoped, tag = 'internal scratch']
  #allocation2 [shape = 'f32[1,10,32]{2,1,0:T(8,128)}', space=vmem, size = 0x2000, scoped, tag = 'scratch operand']
  #allocation3 [shape = 'f32[1,5,32]{2,1,0:T(8,128)}', space=vmem, size = 0x1000, scoped, tag = 'scratch operand']
  %s0 = inlined_call_operand.vmem [shape: f32[2,8,32], index: 0, kind: input, shape index: {}]
  %s1 = inlined_call_operand.vmem [shape: f32[2,32,32], index: 1, kind: input, shape index: {}]
  %s2 = inlined_call_operand.vmem [shape: f32[6,32,32], index: 2, kind: input, shape index: {}]
  %s3 = inlined_call_operand.vmem [shape: f32[32,64], index: 3, kind: input, shape index: {}]
  %s4 = inlined_call_operand.vmem [shape: f32[8,32], index: 4, kind: input, shape index: {}]
  %s5 = inlined_call_operand.vmem [shape: f32[2,8,32], index: 5, kind: output, shape index: {}]
  %s6 = sld [smem:[#allocation0]]
  $region61: #{mic_forward.2} parent=0
    _
  %s8 = ssub.s32 1, %s6
  %s9 = scalar_select 0, %s8, %s6
  loop: start=0, step=1, limit=8
  $region2: #{mic_forward.2} parent=0 // loop_pre_header
    _
  $region3: #{mic_forward.2} parent=0 // loop_header
    %s11 = sphi 0, %s15
    %p12 = scmp.ge.s32.totalorder %s11, 8
    %s18 = sphi 0, %s30
    %s19 = sphi 0, %s26
    %s20 = sphi 0, %s18
    %s21 = sphi 0, %s19
    %s22 = sphi 0, %s20
    %s23 = sphi 0, %s21
    %s33 = sphi 0, %s35
    %s36 = sphi 0, %s33
    %s37 = sphi 0, %s36
    %s53 = sphi 0, %s37
    %s57 = sphi 0, %s57
    %s59 = sphi 0, %s57
    %s60 = sphi 0, %s59
    %s74 = sphi 0, %s60
    %s80 = sphi 0, %s82
    %s83 = sphi 0, %s80
    %s84 = sphi 0, %s83
    %s100 = sphi 0, %s84
    %s104 = sphi 0, %s104
    %s106 = sphi 0, %s104
    %s107 = sphi 0, %s106
    %s121 = sphi 0, %s107
    %s125 = sphi 0, %s125
    %s127 = sphi 0, %s125
    %s128 = sphi 0, %s127
    %s142 = sphi 0, %s128
    %s148 = sphi 0, %s150
    %s151 = sphi 0, %s148
    %s152 = sphi 0, %s151
    %s168 = sphi 0, %s152
  $region4: #{mic_forward.2} parent=0 // loop_header_branch
    %14 = sbr.rel (%p12) target = $region8
  $region5: #{mic_forward.2} parent=0 // loop_body
    %s16 = ssub.s32 %s11, 1
    %s17 = ssub.s32 %s11, 2
    %s24 = sadd.s32 1, %s19
    %p25 = scmp.ge.s32.totalorder %s24, 3
    %s26 = scalar_select %p25, 0, %s24
    %s27 = sadd.s32 1, %s18
    %s28 = scalar_select %p25, %s27, %s18
    %p29 = scmp.ge.s32.totalorder %s28, 2
    %s30 = scalar_select %p29, 0, %s28
    %s31 = ssub.s32 %s18, %s30
    %p32 = scmp.eq.s32.totalorder %s31, 0
    %s34 = sadd.s32 %s33, 1
    %s35 = scalar_select %p32, %s33, %s34
    %p38 = pneg %p32
    %p39 = scmp.eq.s32.totalorder %s11, 5
    %p40 = por %p38, %p39
    %p41 = scmp.ne.s32.totalorder %s33, %s36
    %p42 = scmp.eq.s32.totalorder %s11, 0
    %p43 = por %p41, %p42
    %p44 = scmp.ne.s32.totalorder %s33, %s36
    %p45 = scmp.eq.s32.totalorder %s16, 5
    %p46 = por %p44, %p45
    %p47 = scmp.ne.s32.totalorder %s36, %s37
    %p48 = scmp.eq.s32.totalorder %s16, 0
    %p49 = por %p47, %p48
    %p50 = scmp.ne.s32.totalorder %s36, %s37
    %p51 = scmp.eq.s32.totalorder %s17, 5
    %p52 = por %p50, %p51
    %p54 = scmp.ne.s32.totalorder %s37, %s53
    %p55 = scmp.eq.s32.totalorder %s17, 0
    %p56 = por %p54, %p55
    %s58 = sadd.s32 %s57, 1
    %p61 = scmp.eq.s32.totalorder %s11, 5
    %p62 = scmp.ne.s32.totalorder %s57, %s59
    %p63 = scmp.eq.s32.totalorder %s11, 0
    %p64 = por %p62, %p63
    %p65 = scmp.ne.s32.totalorder %s57, %s59
    %p66 = scmp.eq.s32.totalorder %s16, 5
    %p67 = por %p65, %p66
    %p68 = scmp.ne.s32.totalorder %s59, %s60
    %p69 = scmp.eq.s32.totalorder %s16, 0
    %p70 = por %p68, %p69
    %p71 = scmp.ne.s32.totalorder %s59, %s60
    %p72 = scmp.eq.s32.totalorder %s17, 5
    %p73 = por %p71, %p72
    %p75 = scmp.ne.s32.totalorder %s60, %s74
    %p76 = scmp.eq.s32.totalorder %s17, 0
    %p77 = por %p75, %p76
    %s78 = ssub.s32 %s19, %s26
    %p79 = scmp.eq.s32.totalorder %s78, 0
    %s81 = sadd.s32 %s80, 1
    %s82 = scalar_select %p79, %s80, %s81
    %p85 = pneg %p79
    %p86 = scmp.eq.s32.totalorder %s11, 5
    %p87 = por %p85, %p86
    %p88 = scmp.ne.s32.totalorder %s80, %s83
    %p89 = scmp.eq.s32.totalorder %s11, 0
    %p90 = por %p88, %p89
    %p91 = scmp.ne.s32.totalorder %s80, %s83
    %p92 = scmp.eq.s32.totalorder %s16, 5
    %p93 = por %p91, %p92
    %p94 = scmp.ne.s32.totalorder %s83, %s84
    %p95 = scmp.eq.s32.totalorder %s16, 0
    %p96 = por %p94, %p95
    %p97 = scmp.ne.s32.totalorder %s83, %s84
    %p98 = scmp.eq.s32.totalorder %s17, 5
    %p99 = por %p97, %p98
    %p101 = scmp.ne.s32.totalorder %s84, %s100
    %p102 = scmp.eq.s32.totalorder %s17, 0
    %p103 = por %p101, %p102
    %s105 = sadd.s32 %s104, 1
    %p108 = scmp.eq.s32.totalorder %s11, 5
    %p109 = scmp.ne.s32.totalorder %s104, %s106
    %p110 = scmp.eq.s32.totalorder %s11, 0
    %p111 = por %p109, %p110
    %p112 = scmp.ne.s32.totalorder %s104, %s106
    %p113 = scmp.eq.s32.totalorder %s16, 5
    %p114 = por %p112, %p113
    %p115 = scmp.ne.s32.totalorder %s106, %s107
    %p116 = scmp.eq.s32.totalorder %s16, 0
    %p117 = por %p115, %p116
    %p118 = scmp.ne.s32.totalorder %s106, %s107
    %p119 = scmp.eq.s32.totalorder %s17, 5
    %p120 = por %p118, %p119
    %p122 = scmp.ne.s32.totalorder %s107, %s121
    %p123 = scmp.eq.s32.totalorder %s17, 0
    %p124 = por %p122, %p123
    %s126 = sadd.s32 %s125, 1
    %p129 = scmp.eq.s32.totalorder %s11, 5
    %p130 = scmp.ne.s32.totalorder %s125, %s127
    %p131 = scmp.eq.s32.totalorder %s11, 0
    %p132 = por %p130, %p131
    %p133 = scmp.ne.s32.totalorder %s125, %s127
    %p134 = scmp.eq.s32.totalorder %s16, 5
    %p135 = por %p133, %p134
    %p136 = scmp.ne.s32.totalorder %s127, %s128
    %p137 = scmp.eq.s32.totalorder %s16, 0
    %p138 = por %p136, %p137
    %p139 = scmp.ne.s32.totalorder %s127, %s128
    %p140 = scmp.eq.s32.totalorder %s17, 5
    %p141 = por %p139, %p140
    %p143 = scmp.ne.s32.totalorder %s128, %s142
    %p144 = scmp.eq.s32.totalorder %s17, 0
    %p145 = por %p143, %p144
    %s146 = ssub.s32 %s18, %s30
    %p147 = scmp.eq.s32.totalorder %s146, 0
    %s149 = sadd.s32 %s148, 1
    %s150 = scalar_select %p147, %s148, %s149
    %p153 = pneg %p147
    %p154 = scmp.eq.s32.totalorder %s11, 5
    %p155 = por %p153, %p154
    %p156 = scmp.ne.s32.totalorder %s148, %s151
    %p157 = scmp.eq.s32.totalorder %s11, 0
    %p158 = por %p156, %p157
    %p159 = scmp.ne.s32.totalorder %s148, %s151
    %p160 = scmp.eq.s32.totalorder %s16, 5
    %p161 = por %p159, %p160
    %p162 = scmp.ne.s32.totalorder %s151, %s152
    %p163 = scmp.eq.s32.totalorder %s16, 0
    %p164 = por %p162, %p163
    %p165 = scmp.ne.s32.totalorder %s151, %s152
    %p166 = scmp.eq.s32.totalorder %s17, 5
    %p167 = por %p165, %p166
    %p169 = scmp.ne.s32.totalorder %s152, %s168
    %p170 = scmp.eq.s32.totalorder %s17, 0
    %p171 = por %p169, %p170
    %p172 = scmp.le.s32.totalorder 1, %s11
    %p173 = scmp.lt.s32.totalorder %s11, 7
    %p174 = pnand %p172, %p173
    %p175 = pneg %p174
    // Predicated region
    $region9: #{mic_forward.2} parent=5 // pred_check
      _
    $region10: #{mic_forward.2} parent=5 // pred_check_branch
      %177 = sbr.rel (%p174) target = $region12
    $region11: #{mic_forward.2} parent=5 // pred_region
      %s178 = ssub.s32 %s11, 1
      // Predicated region
      $region13: #{mic_forward.2} parent=11 // pred_check
        %p179 = pneg %p70
      $region14: #{mic_forward.2} parent=11 // pred_check_branch
        %181 = sbr.rel (%p179) target = $region16
      $region15: #{mic_forward.2} parent=11 // pred_region
        _
      $region16: #{mic_forward.2} parent=11 // pred_fallthru
        _
      // Predicated region
      $region17: #{mic_forward.2} parent=11 // pred_check
        %p182 = pneg %p117
      $region18: #{mic_forward.2} parent=11 // pred_check_branch
        %184 = sbr.rel (%p182) target = $region20
      $region19: #{mic_forward.2} parent=11 // pred_region
        _
      $region20: #{mic_forward.2} parent=11 // pred_fallthru
        _
      // Predicated region
      $region21: #{mic_forward.2} parent=11 // pred_check
        %p185 = pneg %p138
      $region22: #{mic_forward.2} parent=11 // pred_check_branch
        %187 = sbr.rel (%p185) target = $region24
      $region23: #{mic_forward.2} parent=11 // pred_region
        _
      $region24: #{mic_forward.2} parent=11 // pred_fallthru
        _
    $region12: #{mic_forward.2} parent=5 // pred_fallthru
      _
    %p188 = scmp.lt.s32.totalorder %s11, 6
    // Predicated region
    $region25: #{mic_forward.2} parent=5 // pred_check
      %p189 = pneg %p188
    $region26: #{mic_forward.2} parent=5 // pred_check_branch
      %191 = sbr.rel (%p189) target = $region28
    $region27: #{mic_forward.2} parent=5 // pred_region
      // Predicated region
      $region29: #{mic_forward.2} parent=27 // pred_check
        %p192 = pneg %p43
      $region30: #{mic_forward.2} parent=27 // pred_check_branch
        %194 = sbr.rel (%p192) target = $region32
      $region31: #{mic_forward.2} parent=27 // pred_region
        %p195 = scmp.lt.s32.totalorder %s18, 1
        %s196 = scalar_select %p195, %s18, 1
        %s197 = smul.addr %s196, 8
        %s198 = scalar_lea.vmem %s0, %s197
      $region32: #{mic_forward.2} parent=27 // pred_fallthru
        _
      // Predicated region
      $region33: #{mic_forward.2} parent=27 // pred_check
        %p199 = pneg %p90
      $region34: #{mic_forward.2} parent=27 // pred_check_branch
        %201 = sbr.rel (%p199) target = $region36
      $region35: #{mic_forward.2} parent=27 // pred_region
        %s202 = smul.u32 2, %s19
        %p203 = scmp.lt.s32.totalorder %s202, 5
        %s204 = scalar_select %p203, %s202, 5
        %s205 = smul.addr %s204, 4
        %s206 = smul.addr %s205, 8
        %s207 = scalar_lea.vmem %s2, %s206
        %s208 = smul.u32 2, %s19
      $region36: #{mic_forward.2} parent=27 // pred_fallthru
        _
    $region28: #{mic_forward.2} parent=5 // pred_fallthru
      _
    %p209 = scmp.le.s32.totalorder 1, %s11
    %p210 = scmp.lt.s32.totalorder %s11, 7
    %p211 = pnand %p209, %p210
    %p212 = pneg %p211
    // Predicated region
    $region37: #{mic_forward.2} parent=5 // pred_check
      _
    $region38: #{mic_forward.2} parent=5 // pred_check_branch
      %214 = sbr.rel (%p211) target = $region40
    $region39: #{mic_forward.2} parent=5 // pred_region
      %s215 = ssub.s32 %s11, 1
      %p216 = scmp.lt.s32.totalorder %s20, 1
      %s217 = scalar_select %p216, %s20, 1
      %s218 = smul.addr %s217, 8
      %s219 = scalar_lea.vmem %s0, %s218
      %p220 = pneg %p49
      %p221 = pneg %p46
      %p222 = pneg %p70
      %p223 = pneg %p67
      %s224 = smul.u32 2, %s21
      %p225 = scmp.lt.s32.totalorder %s224, 5
      %s226 = scalar_select %p225, %s224, 5
      %s227 = smul.addr %s226, 4
      %s228 = smul.addr %s227, 8
      %s229 = scalar_lea.vmem %s2, %s228
      %p230 = pneg %p96
      %p231 = pneg %p93
      %p232 = pneg %p117
      %p233 = pneg %p114
      %p234 = pneg %p138
      %p235 = pneg %p135
      %p236 = pneg %p164
      %p237 = pneg %p161
      %p238 = scmp.lt.s32.totalorder %s20, 1
      %s239 = scalar_select %p238, %s20, 1
      %s240 = smul.addr %s239, 8
      %s241 = scalar_lea.vmem %s5, %s240
      %p242 = scmp.lt.s32.totalorder %s20, 1
      %s243 = scalar_select %p242, %s20, 1
      %s244 = smul.addr %s243, 8
      %s245 = scalar_lea.vmem %s0, %s244
      %s246 = smul.u32 2, %s21
      %p247 = scmp.lt.s32.totalorder %s246, 5
      %s248 = scalar_select %p247, %s246, 5
      %s249 = smul.addr %s248, 4
      %s250 = smul.addr %s249, 8
      %s251 = scalar_lea.vmem %s2, %s250
      %s252 = smul.u32 2, %s21
      %p253 = scmp.lt.s32.totalorder %s20, 1
      %s254 = scalar_select %p253, %s20, 1
      %s255 = smul.addr %s254, 8
      %s256 = scalar_lea.vmem %s5, %s255
      %p257 = scmp.eq.s32.totalorder %s21, 0
      // Predicated region
      $region41: #{mic_forward.2} parent=39 // pred_check
        %p258 = pneg %p257
      $region42: #{mic_forward.2} parent=39 // pred_check_branch
        %260 = sbr.rel (%p258) target = $region44
      $region43: #{mic_forward.2} parent=39 // pred_region
        %v261 = vld [vmem:[%s245] sm:$0xff]
        %v263 = vrot.slane %v261, 7
        %vm265 = vcmask 1040384
        %v266 = vsel %vm265, %v261, %v263
        %v267 = vadd.f32 %v261, %v266
        %v268 = vrot.slane %v261, 1
        %vm270 = vcmask 1046528
        %v271 = vsel %vm270, %v268, %v261
        %v272 = vadd.f32 %v267, %v271
        %v273 = vmul.f32 %v272, 0.33333334
        %v274 = vsub.f32 %v261, %v273
        %v276 = vrot.slane %v274, 7
        %v278 = vsel %vm265, 0.0, %v276
        %v279 = vsel %vm265, %v276, 0.0
        %v282 = vcombine.high %v278, %v278
        %v284 = vunpack.c.l.s4 1983009808
        %v285 = vunpack.c.0.s8 %v284
        %v286 = vlaneseq
        %v287 = vshrl.u32 %v286, 7
        %v288 = vsub.s32 %v285, %v287
        %v289 = vrot.slane %v278, %v288
        %v291 = vunpack.c.l.s4 1983009808
        %v292 = vunpack.c.0.s8 %v291
        %v293 = vlaneseq
        %v294 = vshrl.u32 %v293, 7
        %v295 = vsub.s32 %v292, %v294
        %v296 = vrot.slane %v282, %v295
        %v297 = vcombine.high %v289, %v289
        %v298 = vcombine.high %v296, %v296
        %v300 = vunpack.c.l.s4 1983009808
        %v301 = vunpack.c.0.s8 %v300
        %v302 = vlaneseq
        %v303 = vshrl.u32 %v302, 7
        %v304 = vsub.s32 %v301, %v303
        %v305 = vrot.slane %v279, %v304
        %v306 = vld [vmem:[%s1] sm:$0xff]
        %v307 = vld [vmem:[%s1 + $0x8] sm:$0xff]
        %v308 = vld [vmem:[%s1 + $0x10] sm:$0xff]
        %v309 = vld [vmem:[%s1 + $0x18] sm:$0xff]
        %s310 = scalar_lea.vmem %s1, 32
        %v311 = vld [vmem:[%s310] sm:$0xff]
        %v312 = vld [vmem:[%s310 + $0x8] sm:$0xff]
        %v313 = vld [vmem:[%s310 + $0x10] sm:$0xff]
        %v314 = vld [vmem:[%s310 + $0x18] sm:$0xff]
        %v315 = vlaneseq
        %v316 = vshrl.u32 %v315, 7
        %v317 = vsub.s32 1, %v316
        %v318 = vrot.slane %v289, %v317
        %v319 = vlaneseq
        %v320 = vshrl.u32 %v319, 7
        %v321 = vsub.s32 1, %v320
        %v322 = vrot.slane %v297, %v321
        %v323 = vlaneseq
        %v324 = vshrl.u32 %v323, 7
        %v325 = vsub.s32 1, %v324
        %v326 = vrot.slane %v296, %v325
        %v327 = vlaneseq
        %v328 = vshrl.u32 %v327, 7
        %v329 = vsub.s32 1, %v328
        %v330 = vrot.slane %v298, %v329
        %v331 = vlaneseq
        %v332 = vshrl.u32 %v331, 7
        %v333 = vsub.s32 1, %v332
        %v334 = vrot.slane %v305, %v333
        %vm335 = vcmask 1041409
        %v336 = vsel %vm335, %v322, %v318
        %vm337 = vcmask 1042434
        %v338 = vsel %vm337, %v326, %v336
        %vm339 = vcmask 1043459
        %v340 = vsel %vm339, %v330, %v338
        %vm341 = vcmask 1044484
        %v342 = vsel %vm341, %v334, %v340
        %vm343 = vcmask 261120
        %v344 = vsel %vm343, %v342, 0
        %346 = vmatprep.subr.mxu0 0.0
        %347 = vmatpush1.msra.mxu0 %v311
        %348 = vmatprep.subr.mxu0 0.0
        %349 = vmatpush1.msra.mxu0 %v312
        %350 = vmatprep.subr.mxu0 0.0
        %351 = vmatpush1.msra.mxu0 %v313
        %352 = vmatprep.subr.mxu0 0.0
        %353 = vmatpush1.msra.mxu0 %v314
        %354 = vmatprep.subr.mxu0 0.0
        %355 = vmatpush1.msra.mxu0 0.0
        %356 = vmatprep.subr.mxu0 0.0
        %357 = vmatpush1.msra.mxu0 0.0
        %358 = vmatprep.subr.mxu0 0.0
        %359 = vmatpush1.msra.mxu0 0.0
        %360 = vmatprep.subr.mxu0 0.0
        %361 = vmatpush1.msra.mxu0 0.0
        %362 = vmatprep.subr.mxu0 0.0
        %363 = vmatpush1.msra.mxu0 0.0
        %364 = vmatprep.subr.mxu0 0.0
        %365 = vmatpush1.msra.mxu0 0.0
        %366 = vmatprep.subr.mxu0 0.0
        %367 = vmatpush1.msra.mxu0 0.0
        %368 = vmatprep.subr.mxu0 0.0
        %369 = vmatpush1.msra.mxu0 0.0
        %370 = vmatprep.subr.mxu0 0.0
        %371 = vmatpush1.msra.mxu0 0.0
        %372 = vmatprep.subr.mxu0 0.0
        %373 = vmatpush1.msra.mxu0 0.0
        %374 = vmatprep.subr.mxu0 0.0
        %375 = vmatpush1.msra.mxu0 0.0
        %376 = vmatprep.subr.mxu0 0.0
        %377 = vmatpush1.msra.mxu0 0.0
        %378 = vmatprep.subr.mxu0 0.0
        %379 = vmatpush1.msra.mxu0 0.0
        %380 = vmatprep.subr.mxu0 0.0
        %381 = vmatpush1.msra.mxu0 0.0
        %382 = vmatprep.subr.mxu0 0.0
        %383 = vmatpush1.msra.mxu0 0.0
        %384 = vmatprep.subr.mxu0 0.0
        %385 = vmatpush1.msra.mxu0 0.0
        %386 = vmatprep.subr.mxu0 0.0
        %387 = vmatpush1.msra.mxu0 0.0
        %388 = vmatprep.subr.mxu0 0.0
        %389 = vmatpush1.msra.mxu0 0.0
        %390 = vmatprep.subr.mxu0 0.0
        %391 = vmatpush1.msra.mxu0 0.0
        %392 = vmatprep.subr.mxu0 0.0
        %393 = vmatpush1.msra.mxu0 0.0
        %394 = vmatprep.subr.mxu0 0.0
        %395 = vmatpush1.msra.mxu0 0.0
        %396 = vmatprep.subr.mxu0 0.0
        %397 = vmatpush1.msra.mxu0 0.0
        %398 = vmatprep.subr.mxu0 0.0
        %399 = vmatpush1.msra.mxu0 0.0
        %400 = vmatprep.subr.mxu0 0.0
        %401 = vmatpush1.msra.mxu0 0.0
        %402 = vmatprep.subr.mxu0 0.0
        %403 = vmatpush1.msra.mxu0 0.0
        %404 = vmatprep.subr.mxu0 0.0
        %405 = vmatpush1.msra.mxu0 0.0
        %406 = vmatprep.subr.mxu0 0.0
        %407 = vmatpush1.msra.mxu0 0.0
        %408 = vmatprep.subr.mxu0 0.0
        %409 = vmatpush1.msra.mxu0 0.0
        %410 = vmatprep.mubr.f32.mxu0 0.0
        %411 = vmatmul.mubr.f32.gmra.mrb[0].mxu0 %v344
        %v412 = vpop.f32.mrb[0].mxu0
        %v413 = vadd.f32 0.0, %v412
        %v414 = vpop.f32.mrb[0].mxu0
        %415 = vdwg.mxu0
        %v416 = vlaneseq
        %v417 = vshrl.u32 %v416, 7
        %v418 = vsub.s32 0, %v417
        %v419 = vrot.slane %v289, %v418
        %v420 = vlaneseq
        %v421 = vshrl.u32 %v420, 7
        %v422 = vsub.s32 0, %v421
        %v423 = vrot.slane %v297, %v422
        %v424 = vlaneseq
        %v425 = vshrl.u32 %v424, 7
        %v426 = vsub.s32 0, %v425
        %v427 = vrot.slane %v296, %v426
        %v428 = vlaneseq
        %v429 = vshrl.u32 %v428, 7
        %v430 = vsub.s32 0, %v429
        %v431 = vrot.slane %v298, %v430
        %v432 = vlaneseq
        %v433 = vshrl.u32 %v432, 7
        %v434 = vsub.s32 0, %v433
        %v435 = vrot.slane %v305, %v434
        %v436 = vsel %vm335, %v423, %v419
        %v437 = vsel %vm337, %v427, %v436
        %v438 = vsel %vm339, %v431, %v437
        %v439 = vsel %vm341, %v435, %v438
        %v440 = vsel %vm343, %v439, 0
        %442 = vmatprep.subr.mxu0 0.0
        %443 = vmatpush1.msra.mxu0 %v306
        %444 = vmatprep.subr.mxu0 0.0
        %445 = vmatpush1.msra.mxu0 %v307
        %446 = vmatprep.subr.mxu0 0.0
        %447 = vmatpush1.msra.mxu0 %v308
        %448 = vmatprep.subr.mxu0 0.0
        %449 = vmatpush1.msra.mxu0 %v309
        %450 = vmatprep.subr.mxu0 0.0
        %451 = vmatpush1.msra.mxu0 0.0
        %452 = vmatprep.subr.mxu0 0.0
        %453 = vmatpush1.msra.mxu0 0.0
        %454 = vmatprep.subr.mxu0 0.0
        %455 = vmatpush1.msra.mxu0 0.0
        %456 = vmatprep.subr.mxu0 0.0
        %457 = vmatpush1.msra.mxu0 0.0
        %458 = vmatprep.subr.mxu0 0.0
        %459 = vmatpush1.msra.mxu0 0.0
        %460 = vmatprep.subr.mxu0 0.0
        %461 = vmatpush1.msra.mxu0 0.0
        %462 = vmatprep.subr.mxu0 0.0
        %463 = vmatpush1.msra.mxu0 0.0
        %464 = vmatprep.subr.mxu0 0.0
        %465 = vmatpush1.msra.mxu0 0.0
        %466 = vmatprep.subr.mxu0 0.0
        %467 = vmatpush1.msra.mxu0 0.0
        %468 = vmatprep.subr.mxu0 0.0
        %469 = vmatpush1.msra.mxu0 0.0
        %470 = vmatprep.subr.mxu0 0.0
        %471 = vmatpush1.msra.mxu0 0.0
        %472 = vmatprep.subr.mxu0 0.0
        %473 = vmatpush1.msra.mxu0 0.0
        %474 = vmatprep.subr.mxu0 0.0
        %475 = vmatpush1.msra.mxu0 0.0
        %476 = vmatprep.subr.mxu0 0.0
        %477 = vmatpush1.msra.mxu0 0.0
        %478 = vmatprep.subr.mxu0 0.0
        %479 = vmatpush1.msra.mxu0 0.0
        %480 = vmatprep.subr.mxu0 0.0
        %481 = vmatpush1.msra.mxu0 0.0
        %482 = vmatprep.subr.mxu0 0.0
        %483 = vmatpush1.msra.mxu0 0.0
        %484 = vmatprep.subr.mxu0 0.0
        %485 = vmatpush1.msra.mxu0 0.0
        %486 = vmatprep.subr.mxu0 0.0
        %487 = vmatpush1.msra.mxu0 0.0
        %488 = vmatprep.subr.mxu0 0.0
        %489 = vmatpush1.msra.mxu0 0.0
        %490 = vmatprep.subr.mxu0 0.0
        %491 = vmatpush1.msra.mxu0 0.0
        %492 = vmatprep.subr.mxu0 0.0
        %493 = vmatpush1.msra.mxu0 0.0
        %494 = vmatprep.subr.mxu0 0.0
        %495 = vmatpush1.msra.mxu0 0.0
        %496 = vmatprep.subr.mxu0 0.0
        %497 = vmatpush1.msra.mxu0 0.0
        %498 = vmatprep.subr.mxu0 0.0
        %499 = vmatpush1.msra.mxu0 0.0
        %500 = vmatprep.subr.mxu0 0.0
        %501 = vmatpush1.msra.mxu0 0.0
        %502 = vmatprep.subr.mxu0 0.0
        %503 = vmatpush1.msra.mxu0 0.0
        %504 = vmatprep.subr.mxu0 0.0
        %505 = vmatpush1.msra.mxu0 0.0
        %506 = vmatprep.mubr.f32.mxu0 0.0
        %507 = vmatmul.mubr.f32.gmra.mrb[0].mxu0 %v440
        %v508 = vpop.f32.mrb[0].mxu0
        %v509 = vadd.f32 %v413, %v508
        %v510 = vpop.f32.mrb[0].mxu0
        %511 = vdwg.mxu0
        %v512 = vld [vmem:[%s4] sm:$0x1]
        %v513 = vlaneseq
        %v514 = vshrl.u32 %v513, 7
        %v515 = vsub.s32 0, %v514
        %v516 = vrot.slane %v512, %v515
        %v517 = vadd.f32 %v509, %v516
        %v518 = vtanh.pop %v517
        %519 = vst.msk [vmem:[#allocation2] sm:$0xff] %vm343, 0.0
        %vm520 = vcmask 254976
        %521 = vst.msk [vmem:[#allocation2 + $0x8] sm:$0x3] %vm520, 0.0
        %vm522 = vcmask 258048
        %523 = vst.msk [vmem:[#allocation2 + $0x4] sm:$0x1f] %vm522, %v518
        %524 = vst.msk [vmem:[#allocation3] sm:$0x1f] %vm522, 0.0
      $region44: #{mic_forward.2} parent=39 // pred_fallthru
        _
      %s525 = smul.u32 %s21, 2
      %s526 = scalar_lea.vmem [#allocation2], %s525
      %v527 = vld [vmem:[%s526] sm:$0x1f]
      %v528 = vld [vmem:[%s251] sm:$0xff]
      %v529 = vld [vmem:[%s251 + $0x8] sm:$0xff]
      %v530 = vld [vmem:[%s251 + $0x10] sm:$0xff]
      %v531 = vld [vmem:[%s251 + $0x18] sm:$0xff]
      %s532 = sadd.s32 %s525, 1
      %s533 = scalar_lea.vmem [#allocation2], %s532
      %v534 = vld [vmem:[%s533] sm:$0x1f]
      %s535 = scalar_lea.vmem %s251, 32
      %v536 = vld [vmem:[%s535] sm:$0xff]
      %v537 = vld [vmem:[%s535 + $0x8] sm:$0xff]
      %v538 = vld [vmem:[%s535 + $0x10] sm:$0xff]
      %v539 = vld [vmem:[%s535 + $0x18] sm:$0xff]
      %vm540 = vcmask 261120
      %v542 = vsel %vm540, %v534, 0
      %544 = vmatprep.subr.mxu0 0.0
      %545 = vmatpush1.msra.mxu0 %v536
      %546 = vmatprep.subr.mxu0 0.0
      %547 = vmatpush1.msra.mxu0 %v537
      %548 = vmatprep.subr.mxu0 0.0
      %549 = vmatpush1.msra.mxu0 %v538
      %550 = vmatprep.subr.mxu0 0.0
      %551 = vmatpush1.msra.mxu0 %v539
      %552 = vmatprep.subr.mxu0 0.0
      %553 = vmatpush1.msra.mxu0 0.0
      %554 = vmatprep.subr.mxu0 0.0
      %555 = vmatpush1.msra.mxu0 0.0
      %556 = vmatprep.subr.mxu0 0.0
      %557 = vmatpush1.msra.mxu0 0.0
      %558 = vmatprep.subr.mxu0 0.0
      %559 = vmatpush1.msra.mxu0 0.0
      %560 = vmatprep.subr.mxu0 0.0
      %561 = vmatpush1.msra.mxu0 0.0
      %562 = vmatprep.subr.mxu0 0.0
      %563 = vmatpush1.msra.mxu0 0.0
      %564 = vmatprep.subr.mxu0 0.0
      %565 = vmatpush1.msra.mxu0 0.0
      %566 = vmatprep.subr.mxu0 0.0
      %567 = vmatpush1.msra.mxu0 0.0
      %568 = vmatprep.subr.mxu0 0.0
      %569 = vmatpush1.msra.mxu0 0.0
      %570 = vmatprep.subr.mxu0 0.0
      %571 = vmatpush1.msra.mxu0 0.0
      %572 = vmatprep.subr.mxu0 0.0
      %573 = vmatpush1.msra.mxu0 0.0
      %574 = vmatprep.subr.mxu0 0.0
      %575 = vmatpush1.msra.mxu0 0.0
      %576 = vmatprep.subr.mxu0 0.0
      %577 = vmatpush1.msra.mxu0 0.0
      %578 = vmatprep.subr.mxu0 0.0
      %579 = vmatpush1.msra.mxu0 0.0
      %580 = vmatprep.subr.mxu0 0.0
      %581 = vmatpush1.msra.mxu0 0.0
      %582 = vmatprep.subr.mxu0 0.0
      %583 = vmatpush1.msra.mxu0 0.0
      %584 = vmatprep.subr.mxu0 0.0
      %585 = vmatpush1.msra.mxu0 0.0
      %586 = vmatprep.subr.mxu0 0.0
      %587 = vmatpush1.msra.mxu0 0.0
      %588 = vmatprep.subr.mxu0 0.0
      %589 = vmatpush1.msra.mxu0 0.0
      %590 = vmatprep.subr.mxu0 0.0
      %591 = vmatpush1.msra.mxu0 0.0
      %592 = vmatprep.subr.mxu0 0.0
      %593 = vmatpush1.msra.mxu0 0.0
      %594 = vmatprep.subr.mxu0 0.0
      %595 = vmatpush1.msra.mxu0 0.0
      %596 = vmatprep.subr.mxu0 0.0
      %597 = vmatpush1.msra.mxu0 0.0
      %598 = vmatprep.subr.mxu0 0.0
      %599 = vmatpush1.msra.mxu0 0.0
      %600 = vmatprep.subr.mxu0 0.0
      %601 = vmatpush1.msra.mxu0 0.0
      %602 = vmatprep.subr.mxu0 0.0
      %603 = vmatpush1.msra.mxu0 0.0
      %604 = vmatprep.subr.mxu0 0.0
      %605 = vmatpush1.msra.mxu0 0.0
      %606 = vmatprep.subr.mxu0 0.0
      %607 = vmatpush1.msra.mxu0 0.0
      %608 = vmatprep.mubr.f32.mxu0 0.0
      %609 = vmatmul.mubr.f32.gmra.mrb[0].mxu0 %v542
      %v610 = vpop.f32.mrb[0].mxu0
      %v611 = vadd.f32 0.0, %v610
      %v612 = vpop.f32.mrb[0].mxu0
      %613 = vdwg.mxu0
      %v615 = vsel %vm540, %v527, 0
      %617 = vmatprep.subr.mxu0 0.0
      %618 = vmatpush1.msra.mxu0 %v528
      %619 = vmatprep.subr.mxu0 0.0
      %620 = vmatpush1.msra.mxu0 %v529
      %621 = vmatprep.subr.mxu0 0.0
      %622 = vmatpush1.msra.mxu0 %v530
      %623 = vmatprep.subr.mxu0 0.0
      %624 = vmatpush1.msra.mxu0 %v531
      %625 = vmatprep.subr.mxu0 0.0
      %626 = vmatpush1.msra.mxu0 0.0
      %627 = vmatprep.subr.mxu0 0.0
      %628 = vmatpush1.msra.mxu0 0.0
      %629 = vmatprep.subr.mxu0 0.0
      %630 = vmatpush1.msra.mxu0 0.0
      %631 = vmatprep.subr.mxu0 0.0
      %632 = vmatpush1.msra.mxu0 0.0
      %633 = vmatprep.subr.mxu0 0.0
      %634 = vmatpush1.msra.mxu0 0.0
      %635 = vmatprep.subr.mxu0 0.0
      %636 = vmatpush1.msra.mxu0 0.0
      %637 = vmatprep.subr.mxu0 0.0
      %638 = vmatpush1.msra.mxu0 0.0
      %639 = vmatprep.subr.mxu0 0.0
      %640 = vmatpush1.msra.mxu0 0.0
      %641 = vmatprep.subr.mxu0 0.0
      %642 = vmatpush1.msra.mxu0 0.0
      %643 = vmatprep.subr.mxu0 0.0
      %644 = vmatpush1.msra.mxu0 0.0
      %645 = vmatprep.subr.mxu0 0.0
      %646 = vmatpush1.msra.mxu0 0.0
      %647 = vmatprep.subr.mxu0 0.0
      %648 = vmatpush1.msra.mxu0 0.0
      %649 = vmatprep.subr.mxu0 0.0
      %650 = vmatpush1.msra.mxu0 0.0
      %651 = vmatprep.subr.mxu0 0.0
      %652 = vmatpush1.msra.mxu0 0.0
      %653 = vmatprep.subr.mxu0 0.0
      %654 = vmatpush1.msra.mxu0 0.0
      %655 = vmatprep.subr.mxu0 0.0
      %656 = vmatpush1.msra.mxu0 0.0
      %657 = vmatprep.subr.mxu0 0.0
      %658 = vmatpush1.msra.mxu0 0.0
      %659 = vmatprep.subr.mxu0 0.0
      %660 = vmatpush1.msra.mxu0 0.0
      %661 = vmatprep.subr.mxu0 0.0
      %662 = vmatpush1.msra.mxu0 0.0
      %663 = vmatprep.subr.mxu0 0.0
      %664 = vmatpush1.msra.mxu0 0.0
      %665 = vmatprep.subr.mxu0 0.0
      %666 = vmatpush1.msra.mxu0 0.0
      %667 = vmatprep.subr.mxu0 0.0
      %668 = vmatpush1.msra.mxu0 0.0
      %669 = vmatprep.subr.mxu0 0.0
      %670 = vmatpush1.msra.mxu0 0.0
      %671 = vmatprep.subr.mxu0 0.0
      %672 = vmatpush1.msra.mxu0 0.0
      %673 = vmatprep.subr.mxu0 0.0
      %674 = vmatpush1.msra.mxu0 0.0
      %675 = vmatprep.subr.mxu0 0.0
      %676 = vmatpush1.msra.mxu0 0.0
      %677 = vmatprep.subr.mxu0 0.0
      %678 = vmatpush1.msra.mxu0 0.0
      %679 = vmatprep.subr.mxu0 0.0
      %680 = vmatpush1.msra.mxu0 0.0
      %681 = vmatprep.mubr.f32.mxu0 0.0
      %682 = vmatmul.mubr.f32.gmra.mrb[0].mxu0 %v615
      %v683 = vpop.f32.mrb[0].mxu0
      %v684 = vadd.f32 %v611, %v683
      %v685 = vpop.f32.mrb[0].mxu0
      %686 = vdwg.mxu0
      %v687 = vld [vmem:[#allocation3] sm:$0x1f]
      %v688 = vadd.f32 %v687, %v684
      %vm689 = vcmask 258048
      %690 = vst.msk [vmem:[#allocation3] sm:$0x1f] %vm689, %v688
      %p691 = scmp.eq.s32.totalorder %s21, 2
      // Predicated region
      $region45: #{mic_forward.2} parent=39 // pred_check
        %p692 = pneg %p691
      $region46: #{mic_forward.2} parent=39 // pred_check_branch
        %694 = sbr.rel (%p692) target = $region48
      $region47: #{mic_forward.2} parent=39 // pred_region
        %v695 = vld [vmem:[%s4 + $0x3] sm:$0x1]
        %v696 = vld [vmem:[%s4 + $0x4] sm:$0x1]
        %v697 = vld [vmem:[#allocation3] sm:$0x1f]
        %v698 = vld [vmem:[%s4 + $0x1] sm:$0x1]
        %v699 = vlaneseq
        %v700 = vshrl.u32 %v699, 7
        %v701 = vsub.s32 0, %v700
        %v702 = vrot.slane %v698, %v701
        %v703 = vadd.f32 %v697, %v702
        %v704 = vtanh.pop %v703
        %v705 = vadd.f32 %v704, %v704
        %v706 = vsel %vm689, %v705, 0.0
        %707 = vadd.xlane.f32.xlu0 %v706
        %v708 = vpop.xlane.xlu0 %707
        %v709 = vrcp.pop 32.0
        %v710 = vmul.f32 %v708, %v709
        %v711 = vsub.f32 %v705, %v710
        %v712 = vmul.f32 %v711, %v711
        %v713 = vsel %vm689, %v712, 0.0
        %714 = vadd.xlane.f32.xlu0 %v713
        %v715 = vpop.xlane.xlu0 %714
        %v716 = vmul.f32 %v715, %v709
        %v717 = vadd.f32 %v716, 1e-05
        %v718 = vrsqrt.pop %v717
        %v719 = vmul.f32 %v711, %v718
        %v720 = vlaneseq
        %v721 = vshrl.u32 %v720, 7
        %v722 = vsub.s32 0, %v721
        %v723 = vrot.slane %v695, %v722
        %v724 = vmul.f32 %v719, %v723
        %v725 = vlaneseq
        %v726 = vshrl.u32 %v725, 7
        %v727 = vsub.s32 0, %v726
        %v728 = vrot.slane %v696, %v727
        %v729 = vadd.f32 %v724, %v728
        %v730 = vld [vmem:[%s3] sm:$0xff]
        %v731 = vld [vmem:[%s3 + $0x8] sm:$0xff]
        %v732 = vld [vmem:[%s3 + $0x10] sm:$0xff]
        %v733 = vld [vmem:[%s3 + $0x18] sm:$0xff]
        %v735 = vsel %vm540, %v729, 0
        %737 = vmatprep.subr.mxu0 0.0
        %738 = vmatpush1.msra.mxu0 %v730
        %739 = vmatprep.subr.mxu0 0.0
        %740 = vmatpush1.msra.mxu0 %v731
        %741 = vmatprep.subr.mxu0 0.0
        %742 = vmatpush1.msra.mxu0 %v732
        %743 = vmatprep.subr.mxu0 0.0
        %744 = vmatpush1.msra.mxu0 %v733
        %745 = vmatprep.subr.mxu0 0.0
        %746 = vmatpush1.msra.mxu0 0.0
        %747 = vmatprep.subr.mxu0 0.0
        %748 = vmatpush1.msra.mxu0 0.0
        %749 = vmatprep.subr.mxu0 0.0
        %750 = vmatpush1.msra.mxu0 0.0
        %751 = vmatprep.subr.mxu0 0.0
        %752 = vmatpush1.msra.mxu0 0.0
        %753 = vmatprep.subr.mxu0 0.0
        %754 = vmatpush1.msra.mxu0 0.0
        %755 = vmatprep.subr.mxu0 0.0
        %756 = vmatpush1.msra.mxu0 0.0
        %757 = vmatprep.subr.mxu0 0.0
        %758 = vmatpush1.msra.mxu0 0.0
        %759 = vmatprep.subr.mxu0 0.0
        %760 = vmatpush1.msra.mxu0 0.0
        %761 = vmatprep.subr.mxu0 0.0
        %762 = vmatpush1.msra.mxu0 0.0
        %763 = vmatprep.subr.mxu0 0.0
        %764 = vmatpush1.msra.mxu0 0.0
        %765 = vmatprep.subr.mxu0 0.0
        %766 = vmatpush1.msra.mxu0 0.0
        %767 = vmatprep.subr.mxu0 0.0
        %768 = vmatpush1.msra.mxu0 0.0
        %769 = vmatprep.subr.mxu0 0.0
        %770 = vmatpush1.msra.mxu0 0.0
        %771 = vmatprep.subr.mxu0 0.0
        %772 = vmatpush1.msra.mxu0 0.0
        %773 = vmatprep.subr.mxu0 0.0
        %774 = vmatpush1.msra.mxu0 0.0
        %775 = vmatprep.subr.mxu0 0.0
        %776 = vmatpush1.msra.mxu0 0.0
        %777 = vmatprep.subr.mxu0 0.0
        %778 = vmatpush1.msra.mxu0 0.0
        %779 = vmatprep.subr.mxu0 0.0
        %780 = vmatpush1.msra.mxu0 0.0
        %781 = vmatprep.subr.mxu0 0.0
        %782 = vmatpush1.msra.mxu0 0.0
        %783 = vmatprep.subr.mxu0 0.0
        %784 = vmatpush1.msra.mxu0 0.0
        %785 = vmatprep.subr.mxu0 0.0
        %786 = vmatpush1.msra.mxu0 0.0
        %787 = vmatprep.subr.mxu0 0.0
        %788 = vmatpush1.msra.mxu0 0.0
        %789 = vmatprep.subr.mxu0 0.0
        %790 = vmatpush1.msra.mxu0 0.0
        %791 = vmatprep.subr.mxu0 0.0
        %792 = vmatpush1.msra.mxu0 0.0
        %793 = vmatprep.subr.mxu0 0.0
        %794 = vmatpush1.msra.mxu0 0.0
        %795 = vmatprep.subr.mxu0 0.0
        %796 = vmatpush1.msra.mxu0 0.0
        %797 = vmatprep.subr.mxu0 0.0
        %798 = vmatpush1.msra.mxu0 0.0
        %799 = vmatprep.subr.mxu0 0.0
        %800 = vmatpush1.msra.mxu0 0.0
        %801 = vmatprep.mubr.f32.mxu0 0.0
        %802 = vmatmul.mubr.f32.gmra.mrb[0].mxu0 %v735
        %v803 = vpop.f32.mrb[0].mxu0
        %v804 = vadd.f32 0.0, %v803
        %v805 = vpop.f32.mrb[0].mxu0
        %806 = vdwg.mxu0
        %v809 = vunpack.c.l.s4 1966171168
        %v810 = vunpack.c.0.s8 %v809
        %v811 = vlaneseq
        %v812 = vshrl.u32 %v811, 7
        %v813 = vsub.s32 %v810, %v812
        %v814 = vrot.slane %v804, %v813
        %v815 = vcombine.high %v814, %v814
        %v817 = vunpack.c.l.s4 1966171168
        %v818 = vunpack.c.0.s8 %v817
        %v819 = vlaneseq
        %v820 = vshrl.u32 %v819, 7
        %v821 = vsub.s32 %v818, %v820
        %v822 = vrot.slane %v814, %v821
        %v824 = vunpack.c.l.s4 1966171168
        %v825 = vunpack.c.0.s8 %v824
        %v826 = vlaneseq
        %v827 = vshrl.u32 %v826, 7
        %v828 = vsub.s32 %v825, %v827
        %v829 = vrot.slane %v815, %v828
        %v830 = vcombine.high %v822, %v822
        %v831 = vcombine.high %v829, %v829
        %v836 = vlaneseq
        %v837 = vshrl.u32 %v836, 7
        %v838 = vsub.s32 0, %v837
        %v839 = vrot.slane %v822, %v838
        %v840 = vlaneseq
        %v841 = vshrl.u32 %v840, 7
        %v842 = vsub.s32 0, %v841
        %v843 = vrot.slane %v829, %v842
        %v844 = vlaneseq
        %v845 = vshrl.u32 %v844, 7
        %v846 = vsub.s32 0, %v845
        %v847 = vrot.slane %v830, %v846
        %v848 = vlaneseq
        %v849 = vshrl.u32 %v848, 7
        %v850 = vsub.s32 0, %v849
        %v851 = vrot.slane %v831, %v850
        %852 = vrot.lane.b32.xlu0 %v839, 96
        %v853 = vpop.permute.xlu0 %852
        %854 = vrot.lane.b32.xlu0 %v843, 96
        %v855 = vpop.permute.xlu0 %854
        %856 = vrot.lane.b32.xlu0 %v847, 96
        %v857 = vpop.permute.xlu0 %856
        %858 = vrot.lane.b32.xlu0 %v851, 96
        %v859 = vpop.permute.xlu0 %858
        %vm864 = vcmask 1040384
        %v865 = vsel %vm864, %v822, %v853
        %v866 = vsel %vm864, %v829, %v855
        %v867 = vsel %vm864, %v830, %v857
        %v868 = vsel %vm864, %v831, %v859
        %v869 = vld [vmem:[%s4 + $0x2] sm:$0x1]
        %v870 = vlaneseq
        %v871 = vshrl.u32 %v870, 7
        %v872 = vsub.s32 0, %v871
        %v873 = vrot.slane %v869, %v872
        %v875 = vcombine.high %v873, %v873
        %v877 = vunpack.c.l.s4 1983009808
        %v878 = vunpack.c.0.s8 %v877
        %v879 = vlaneseq
        %v880 = vshrl.u32 %v879, 7
        %v881 = vsub.s32 %v878, %v880
        %v882 = vrot.slane %v873, %v881
        %v884 = vunpack.c.l.s4 1983009808
        %v885 = vunpack.c.0.s8 %v884
        %v886 = vlaneseq
        %v887 = vshrl.u32 %v886, 7
        %v888 = vsub.s32 %v885, %v887
        %v889 = vrot.slane %v875, %v888
        %v890 = vcombine.high %v882, %v882
        %v891 = vcombine.high %v889, %v889
        %v896 = vadd.f32 %v865, %v882
        %v897 = vadd.f32 %v866, %v890
        %v898 = vadd.f32 %v867, %v889
        %v899 = vadd.f32 %v868, %v891
        %v900 = vtanh.pop %v896
        %v901 = vtanh.pop %v897
        %v902 = vtanh.pop %v898
        %v903 = vtanh.pop %v899
        %v904 = vld [vmem:[%s245] sm:$0xff]
        %v906 = vrot.slane %v904, 7
        %v908 = vsel %vm864, %v904, %v906
        %v909 = vadd.f32 %v904, %v908
        %v910 = vrot.slane %v904, 1
        %vm912 = vcmask 1046528
        %v913 = vsel %vm912, %v910, %v904
        %v914 = vadd.f32 %v909, %v913
        %v915 = vmul.f32 %v914, 0.33333334
        %v916 = vsub.f32 %v904, %v915
        %v918 = vcombine.high %v916, %v916
        %v920 = vunpack.c.l.s4 1983009808
        %v921 = vunpack.c.0.s8 %v920
        %v922 = vlaneseq
        %v923 = vshrl.u32 %v922, 7
        %v924 = vsub.s32 %v921, %v923
        %v925 = vrot.slane %v916, %v924
        %v927 = vunpack.c.l.s4 1983009808
        %v928 = vunpack.c.0.s8 %v927
        %v929 = vlaneseq
        %v930 = vshrl.u32 %v929, 7
        %v931 = vsub.s32 %v928, %v930
        %v932 = vrot.slane %v918, %v931
        %v933 = vcombine.high %v925, %v925
        %v934 = vcombine.high %v932, %v932
        %v939 = vadd.f32 %v900, %v925
        %v940 = vadd.f32 %v901, %v933
        %v941 = vadd.f32 %v902, %v932
        %v942 = vadd.f32 %v903, %v934
        %v947 = vcombine.low %v939, %v940
        %v948 = vcombine.low %v941, %v942
        %v950 = vunpack.c.l.s4 1983009808
        %v951 = vunpack.c.0.s8 %v950
        %v952 = vlaneseq
        %v953 = vshrl.u32 %v952, 7
        %v954 = vsub.s32 %v951, %v953
        %v955 = vrot.slane %v947, %v954
        %v957 = vunpack.c.l.s4 1983009808
        %v958 = vunpack.c.0.s8 %v957
        %v959 = vlaneseq
        %v960 = vshrl.u32 %v959, 7
        %v961 = vsub.s32 %v958, %v960
        %v962 = vrot.slane %v948, %v961
        %v963 = vcombine.low %v955, %v962
        %v965 = vsel %vm540, %v963, 0.0
        %966 = vadd.xlane.f32.xlu0 %v965
        %v967 = vpop.xlane.xlu0 %966
        %v968 = vmul.f32 %v967, %v709
        %v971 = vunpack.c.l.s4 269488144
        %v972 = vunpack.c.0.s8 %v971
        %v973 = vlaneseq
        %v974 = vshrl.u32 %v973, 7
        %v975 = vsub.s32 %v972, %v974
        %v976 = vrot.slane %v968, %v975
        %v978 = vunpack.c.l.s4 842150450
        %v979 = vunpack.c.0.s8 %v978
        %v980 = vlaneseq
        %v981 = vshrl.u32 %v980, 7
        %v982 = vsub.s32 %v979, %v981
        %v983 = vrot.slane %v968, %v982
        %v985 = vunpack.c.l.s4 1414812756
        %v986 = vunpack.c.0.s8 %v985
        %v987 = vlaneseq
        %v988 = vshrl.u32 %v987, 7
        %v989 = vsub.s32 %v986, %v988
        %v990 = vrot.slane %v968, %v989
        %v992 = vunpack.c.l.s4 1987475062
        %v993 = vunpack.c.0.s8 %v992
        %v994 = vlaneseq
        %v995 = vshrl.u32 %v994, 7
        %v996 = vsub.s32 %v993, %v995
        %v997 = vrot.slane %v968, %v996
        %v1002 = vsub.f32 %v939, %v976
        %v1003 = vsub.f32 %v940, %v983
        %v1004 = vsub.f32 %v941, %v990
        %v1005 = vsub.f32 %v942, %v997
        %v1006 = vmul.f32 %v1002, %v1002
        %v1007 = vmul.f32 %v1003, %v1003
        %v1008 = vmul.f32 %v1004, %v1004
        %v1009 = vmul.f32 %v1005, %v1005
        %v1014 = vcombine.low %v1006, %v1007
        %v1015 = vcombine.low %v1008, %v1009
        %v1017 = vunpack.c.l.s4 1983009808
        %v1018 = vunpack.c.0.s8 %v1017
        %v1019 = vlaneseq
        %v1020 = vshrl.u32 %v1019, 7
        %v1021 = vsub.s32 %v1018, %v1020
        %v1022 = vrot.slane %v1014, %v1021
        %v1024 = vunpack.c.l.s4 1983009808
        %v1025 = vunpack.c.0.s8 %v1024
        %v1026 = vlaneseq
        %v1027 = vshrl.u32 %v1026, 7
        %v1028 = vsub.s32 %v1025, %v1027
        %v1029 = vrot.slane %v1015, %v1028
        %v1030 = vcombine.low %v1022, %v1029
        %v1032 = vsel %vm540, %v1030, 0.0
        %1033 = vadd.xlane.f32.xlu0 %v1032
        %v1034 = vpop.xlane.xlu0 %1033
        %v1035 = vmul.f32 %v1034, %v709
        %v1036 = vadd.f32 %v1035, 1e-05
        %v1037 = vrsqrt.pop %v1036
        %v1040 = vunpack.c.l.s4 269488144
        %v1041 = vunpack.c.0.s8 %v1040
        %v1042 = vlaneseq
        %v1043 = vshrl.u32 %v1042, 7
        %v1044 = vsub.s32 %v1041, %v1043
        %v1045 = vrot.slane %v1037, %v1044
        %v1047 = vunpack.c.l.s4 842150450
        %v1048 = vunpack.c.0.s8 %v1047
        %v1049 = vlaneseq
        %v1050 = vshrl.u32 %v1049, 7
        %v1051 = vsub.s32 %v1048, %v1050
        %v1052 = vrot.slane %v1037, %v1051
        %v1054 = vunpack.c.l.s4 1414812756
        %v1055 = vunpack.c.0.s8 %v1054
        %v1056 = vlaneseq
        %v1057 = vshrl.u32 %v1056, 7
        %v1058 = vsub.s32 %v1055, %v1057
        %v1059 = vrot.slane %v1037, %v1058
        %v1061 = vunpack.c.l.s4 1987475062
        %v1062 = vunpack.c.0.s8 %v1061
        %v1063 = vlaneseq
        %v1064 = vshrl.u32 %v1063, 7
        %v1065 = vsub.s32 %v1062, %v1064
        %v1066 = vrot.slane %v1037, %v1065
        %v1071 = vmul.f32 %v1002, %v1045
        %v1072 = vmul.f32 %v1003, %v1052
        %v1073 = vmul.f32 %v1004, %v1059
        %v1074 = vmul.f32 %v1005, %v1066
        %v1076 = vcombine.high %v723, %v723
        %v1078 = vunpack.c.l.s4 1983009808
        %v1079 = vunpack.c.0.s8 %v1078
        %v1080 = vlaneseq
        %v1081 = vshrl.u32 %v1080, 7
        %v1082 = vsub.s32 %v1079, %v1081
        %v1083 = vrot.slane %v723, %v1082
        %v1085 = vunpack.c.l.s4 1983009808
        %v1086 = vunpack.c.0.s8 %v1085
        %v1087 = vlaneseq
        %v1088 = vshrl.u32 %v1087, 7
        %v1089 = vsub.s32 %v1086, %v1088
        %v1090 = vrot.slane %v1076, %v1089
        %v1091 = vcombine.high %v1083, %v1083
        %v1092 = vcombine.high %v1090, %v1090
        %v1097 = vmul.f32 %v1071, %v1083
        %v1098 = vmul.f32 %v1072, %v1091
        %v1099 = vmul.f32 %v1073, %v1090
        %v1100 = vmul.f32 %v1074, %v1092
        %v1102 = vcombine.high %v728, %v728
        %v1104 = vunpack.c.l.s4 1983009808
        %v1105 = vunpack.c.0.s8 %v1104
        %v1106 = vlaneseq
        %v1107 = vshrl.u32 %v1106, 7
        %v1108 = vsub.s32 %v1105, %v1107
        %v1109 = vrot.slane %v728, %v1108
        %v1111 = vunpack.c.l.s4 1983009808
        %v1112 = vunpack.c.0.s8 %v1111
        %v1113 = vlaneseq
        %v1114 = vshrl.u32 %v1113, 7
        %v1115 = vsub.s32 %v1112, %v1114
        %v1116 = vrot.slane %v1102, %v1115
        %v1117 = vcombine.high %v1109, %v1109
        %v1118 = vcombine.high %v1116, %v1116
        %v1123 = vadd.f32 %v1097, %v1109
        %v1124 = vadd.f32 %v1098, %v1117
        %v1125 = vadd.f32 %v1099, %v1116
        %v1126 = vadd.f32 %v1100, %v1118
        %v1131 = vcombine.low %v1123, %v1124
        %v1132 = vcombine.low %v1125, %v1126
        %v1134 = vunpack.c.l.s4 1983009808
        %v1135 = vunpack.c.0.s8 %v1134
        %v1136 = vlaneseq
        %v1137 = vshrl.u32 %v1136, 7
        %v1138 = vsub.s32 %v1135, %v1137
        %v1139 = vrot.slane %v1131, %v1138
        %v1141 = vunpack.c.l.s4 1983009808
        %v1142 = vunpack.c.0.s8 %v1141
        %v1143 = vlaneseq
        %v1144 = vshrl.u32 %v1143, 7
        %v1145 = vsub.s32 %v1142, %v1144
        %v1146 = vrot.slane %v1132, %v1145
        %v1147 = vcombine.low %v1139, %v1146
        %1149 = vst.msk [vmem:[%s256] sm:$0xff] %vm540, %v1147
      $region48: #{mic_forward.2} parent=39 // pred_fallthru
        _
      %p1150 = scmp.lt.s32.totalorder %s20, 1
      %s1151 = scalar_select %p1150, %s20, 1
      %s1152 = smul.addr %s1151, 8
      %s1153 = scalar_lea.vmem %s5, %s1152
      // Predicated region
      $region49: #{mic_forward.2} parent=39 // pred_check
        %p1154 = pneg %p161
      $region50: #{mic_forward.2} parent=39 // pred_check_branch
        %1156 = sbr.rel (%p1154) target = $region52
      $region51: #{mic_forward.2} parent=39 // pred_region
        _
      $region52: #{mic_forward.2} parent=39 // pred_fallthru
        _
    $region40: #{mic_forward.2} parent=5 // pred_fallthru
      _
    %p1157 = scmp.le.s32.totalorder 2, %s11
    // Predicated region
    $region53: #{mic_forward.2} parent=5 // pred_check
      %p1158 = pneg %p1157
    $region54: #{mic_forward.2} parent=5 // pred_check_branch
      %1160 = sbr.rel (%p1158) target = $region56
    $region55: #{mic_forward.2} parent=5 // pred_region
      %s1161 = ssub.s32 %s11, 2
      // Predicated region
      $region57: #{mic_forward.2} parent=55 // pred_check
        %p1162 = pneg %p167
      $region58: #{mic_forward.2} parent=55 // pred_check_branch
        %1164 = sbr.rel (%p1162) target = $region60
      $region59: #{mic_forward.2} parent=55 // pred_region
        %p1165 = scmp.lt.s32.totalorder %s22, 1
        %s1166 = scalar_select %p1165, %s22, 1
        %s1167 = smul.addr %s1166, 8
        %s1168 = scalar_lea.vmem %s5, %s1167
      $region60: #{mic_forward.2} parent=55 // pred_fallthru
        _
    $region56: #{mic_forward.2} parent=5 // pred_fallthru
      _
  $region6: #{mic_forward.2} parent=0 // loop_footer
    %s15 = sadd.s32 1, %s11
  $region7: #{mic_forward.2} parent=0 // loop_footer_branch
    %10 = sbr.rel target = $region3
  $region8: #{mic_forward.2} parent=0 // loop_exit
    _

</llo_original>
